<compile_context>
chip_gen: v6e
topology: v6e:2x2x1
jax: 0.10.0
libtpu: 0.0.40
codegen_flags: <defaults>
</compile_context>

<pallas_src>
import functools

import jax
import jax.numpy as jnp
from jax import lax
from jax.experimental import pallas as pl
from jax.experimental.pallas import tpu as pltpu

# ---------------------------------------------------------------------------
# Config (the module's external `config` dict). Structurally identical to
# SegNeXt's Hamburger head (MD_S=1, softmax-initialised NMF), sized small.
# ---------------------------------------------------------------------------
ENC_EMBED_DIMS = [64, 128, 320, 512]        # hardcoded inside HamDecoder.__init__
CONFIG = dict(ham_channels=128, put_cheese=True,
              MD_S=1, MD_D=128, MD_R=64, EVAL_STEPS=6, INV_T=1.0)
EPS = 1e-6

# Contract the leading (row) dim of both operands: A^T @ B without an XLU transpose.
_CONTRACT_DIM0 = (((0,), (0,)), ((), ()))
# Contract the trailing dim of both operands: A @ B^T without an XLU transpose.
_CONTRACT_DIM1 = (((1,), (1,)), ((), ()))


# ---------------------------------------------------------------------------
# Stage 1: squeeze (ConvRelu) + lower_bread (1x1 conv + bias + ReLU), N-tiled
# ---------------------------------------------------------------------------
def _squeeze_lower_kernel(x_ref, wsq_ref, wlb_ref, blb_ref, y_ref, z_ref):
    f32 = jnp.float32
    bf16 = jnp.bfloat16
    x = x_ref[0]                                                   # (tn, Cin) bf16
    # squeeze: ConvRelu = 1x1 conv (bias=False) + ReLU
    y = jnp.maximum(jnp.dot(x, wsq_ref[...], preferred_element_type=f32), 0.0)
    # HamBurger.lower_bread: 1x1 conv (+bias) + ReLU
    z = jnp.maximum(
        jnp.dot(y.astype(bf16), wlb_ref[...], preferred_element_type=f32) + blb_ref[...],
        0.0)
    # bf16 intermediates: halves the y/z HBM round trip between stages.
    y_ref[0] = y.astype(y_ref.dtype)                               # shortcut for residual
    z_ref[0] = z.astype(z_ref.dtype)


# ---------------------------------------------------------------------------
# Stage 2: NMF2D only (per batch element).  Emits coef + final bases.
# ---------------------------------------------------------------------------
def _nmf_kernel(z_ref, bases_ref, coef_ref, bases_out_ref, *, steps, inv_t):
    f32 = jnp.float32
    bf16 = jnp.bfloat16
    z = z_ref[0]                                                   # (N, D) bf16 (MXU only)
    bases0 = bases_ref[0]                                          # (D, R) f32

    def coef_update(coef, bases, num):
        # den = coef @ (bases^T @ bases); bf16 MXU operands, f32 accumulate.
        btb = lax.dot_general(bases.astype(bf16), bases.astype(bf16),
                              _CONTRACT_DIM0, preferred_element_type=f32)   # (R, R)
        den = jnp.dot(coef.astype(bf16), btb.astype(bf16),
                      preferred_element_type=f32)                           # (N, R)
        return coef * num * pl.reciprocal(den + EPS, approx=True)           # EUP slot

    def bases_update(coef, bases):
        coef_b = coef.astype(bf16)
        # num_b = z^T @ coef ; den_b = bases @ (coef^T @ coef)
        num_b = lax.dot_general(z, coef_b, _CONTRACT_DIM0,
                                preferred_element_type=f32)                 # (D, R)
        ctc = lax.dot_general(coef_b, coef_b, _CONTRACT_DIM0,
                              preferred_element_type=f32)                   # (R, R)
        den_b = jnp.dot(bases.astype(bf16), ctc.astype(bf16),
                        preferred_element_type=f32)                         # (D, R)
        return bases * num_b * pl.reciprocal(den_b + EPS, approx=False)

    # NMF2D: softmax-initialised coefficients; logits reused as the iter-0 numerator.
    logits = jnp.dot(z, bases0.astype(bf16), preferred_element_type=f32)    # (N, R)
    coef = jax.nn.softmax(inv_t * logits, axis=-1)
    bases = bases0

    if steps > 0:
        coef = coef_update(coef, bases, logits)   # bases unchanged yet -> num == logits
        bases = bases_update(coef, bases)

        def mu_iter(_, carry):
            c, b = carry
            num = jnp.dot(z, b.astype(bf16), preferred_element_type=f32)    # (N, R)
            c = coef_update(c, b, num)
            b = bases_update(c, b)
            return c, b

        coef, bases = lax.fori_loop(1, steps, mu_iter, (coef, bases), unroll=True)

    # compute_coef: one extra coefficient refinement with the final bases.
    num = jnp.dot(z, bases.astype(bf16), preferred_element_type=f32)
    coef = coef_update(coef, bases, num)

    coef_ref[0] = coef.astype(coef_ref.dtype)
    bases_out_ref[0] = bases.astype(bases_out_ref.dtype)


# ---------------------------------------------------------------------------
# Stage 3: recon + cheese + upper_bread(+residual+ReLU) + align, N-tiled
# ---------------------------------------------------------------------------
def _tail_kernel(coef_ref, bases_ref, y_ref, wch_ref, bch_ref, wub_ref, wal_ref,
                 out_ref):
    f32 = jnp.float32
    bf16 = jnp.bfloat16
    coef = coef_ref[0]                                             # (tn, R) bf16
    bases = bases_ref[0]                                           # (D, R)  bf16
    # reconstruction: (coef @ bases^T) -> (tn, D)
    recon = lax.dot_general(coef, bases, _CONTRACT_DIM1, preferred_element_type=f32)
    # cheese: ConvBNReLU (BN folded at eval with init running stats -> identity)
    w = jnp.maximum(
        jnp.dot(recon.astype(bf16), wch_ref[...], preferred_element_type=f32)
        + bch_ref[...], 0.0)
    # upper_bread (1x1 conv, bias=False) + residual + ReLU; shortcut read at use site
    h = jnp.maximum(
        jnp.dot(w.astype(bf16), wub_ref[...], preferred_element_type=f32)
        + y_ref[0].astype(f32), 0.0)
    # align: ConvRelu(ham_channels, 1) emitted as a lane-dense (1, tn) row
    o = jnp.maximum(
        lax.dot_general(wal_ref[...], h.astype(bf16), _CONTRACT_DIM1,
                        preferred_element_type=f32), 0.0)          # (1, tn)
    out_ref[0] = o.astype(out_ref.dtype)


# ---------------------------------------------------------------------------
# VMEM sizing helpers (per-generation aware)
# ---------------------------------------------------------------------------
def _vmem_capacity_bytes():
    try:
        cap = int(pltpu.get_tpu_info().vmem_capacity_bytes)
        if cap > 0:
            return cap
    except Exception:
        pass
    return 64 << 20          # conservative fallback (v7x per-core)


def _vmem_limit(estimate_bytes, capacity_bytes):
    # explicit scoped-VMEM request: estimate + headroom, capped at ~85% of
    # physical to leave Mosaic internal scratch / semaphore headroom.
    cap = int(0.85 * capacity_bytes)
    return int(min(max(estimate_bytes + (8 << 20), 16 << 20), cap))


def ham_decoder_forward(features, params):
    """features: list of NCHW arrays with channels ENC_EMBED_DIMS."""
    B, _, H, W = features[0].shape
    N = H * W

    # Bicubic resize to features[0] spatial size + channel concat (plain-JAX glue).
    # features[0] is already at target size -> identity, skip its resize.
    # TODO(synk): jax.image 'cubic' kernel (a=-0.5) vs torch bicubic (a=-0.75) differ slightly.
    bf16 = jnp.bfloat16
    resized = [features[0]] + [
        jax.image.resize(f, (f.shape[0], f.shape[1], H, W), method='cubic')
        for f in features[1:]]
    # Cast to bf16 *before* the concat/transpose so the big layout shuffle moves bf16.
    x = jnp.concatenate([r.astype(bf16) for r in resized], axis=1)  # (B, Cin, H, W)
    x = jnp.transpose(x, (0, 2, 3, 1)).reshape(B, N, -1)            # (B, N, Cin) bf16

    Cin = x.shape[-1]
    Cham = CONFIG['ham_channels']
    D, R = CONFIG['MD_D'], CONFIG['MD_R']
    bases, wsq, wlb, blb, wch, bch, wub, wal = params

    wsq_bf = wsq.astype(bf16)
    wlb_bf = wlb.astype(bf16)
    wch_bf = wch.astype(bf16)
    wub_bf = wub.astype(bf16)
    wal_bf = wal.T.astype(bf16)                                # (1, Cham), lane-dense

    cap = _vmem_capacity_bytes()
    # N-tile for the N-parallel stages: biggest standard tile that divides N.
    # v5e/v6e (128 MiB VMEM) may go up to 4096; v7x (64 MiB) stays at <= 2048.
    tile_cands = (4096, 2048, 1024, 512, 256, 128) if cap > (96 << 20) \
        else (2048, 1024, 512, 256, 128)
    tn = N
    for cand in tile_cands:
        if N % cand == 0:
            tn = cand
            break

    # ---- Stage 1: squeeze + lower_bread, tiled over (batch, N) -------------
    s1_bytes = (2 * tn * Cin * 2                         # x tile (bf16, double-buffered)
                + 2 * (Cin * Cham + Cham * D) * 2 + 2 * D * 4
                + 2 * tn * (Cham + D) * 2)               # y / z bf16 output tiles
    y, z = pl.pallas_call(
        _squeeze_lower_kernel,
        out_shape=(jax.ShapeDtypeStruct((B, N, Cham), bf16),
                   jax.ShapeDtypeStruct((B, N, D), bf16)),
        grid_spec=pltpu.PrefetchScalarGridSpec(
            num_scalar_prefetch=0,
            grid=(B, N // tn),
            in_specs=[
                pl.BlockSpec((1, tn, Cin), lambda b, n: (b, n, 0)),   # x tile
                pl.BlockSpec((Cin, Cham), lambda b, n: (0, 0)),       # squeeze W
                pl.BlockSpec((Cham, D), lambda b, n: (0, 0)),         # lower_bread W
                pl.BlockSpec((1, D), lambda b, n: (0, 0)),            # lower_bread bias
            ],
            out_specs=[
                pl.BlockSpec((1, tn, Cham), lambda b, n: (b, n, 0)),  # shortcut y
                pl.BlockSpec((1, tn, D), lambda b, n: (b, n, 0)),     # z
            ],
        ),
        compiler_params=pltpu.CompilerParams(
            dimension_semantics=("parallel", "parallel"),
            vmem_limit_bytes=_vmem_limit(s1_bytes, cap)),
    )(x, wsq_bf, wlb_bf, blb)

    # ---- Stage 2: NMF2D only (per batch element) ----------------------------
    kernel2 = functools.partial(_nmf_kernel,
                                steps=CONFIG['EVAL_STEPS'], inv_t=CONFIG['INV_T'])
    s2_bytes = (2 * N * D * 2                            # z input block (bf16)
                + 2 * D * R * 4                          # bases input
                + 2 * (N * R + D * R) * 2                # coef / bases outputs (bf16)
                + 3 * N * (R + D) * 4)                   # f32 temporaries (coef/num/den)
    coef, bases_out = pl.pallas_call(
        kernel2,
        out_shape=(jax.ShapeDtypeStruct((B, N, R), bf16),
                   jax.ShapeDtypeStruct((B, D, R), bf16)),
        grid_spec=pltpu.PrefetchScalarGridSpec(
            num_scalar_prefetch=0,
            grid=(B,),
            in_specs=[
                pl.BlockSpec((1, N, D), lambda b: (b, 0, 0)),      # z (per-batch)
                pl.BlockSpec((1, D, R), lambda b: (b, 0, 0)),      # NMF bases (per-batch)
            ],
            out_specs=[
                pl.BlockSpec((1, N, R), lambda b: (b, 0, 0)),      # coef
                pl.BlockSpec((1, D, R), lambda b: (b, 0, 0)),      # final bases
            ],
        ),
        compiler_params=pltpu.CompilerParams(
            dimension_semantics=("parallel",),
            vmem_limit_bytes=_vmem_limit(s2_bytes, cap)),
    )(z, bases)

    # ---- Stage 3: recon + cheese + upper_bread + residual + align, N-tiled --
    s3_bytes = (2 * tn * (R + Cham) * 2                  # coef / shortcut tiles (bf16)
                + 2 * D * R * 2                          # bases
                + 2 * ((D * D + D * Cham + Cham) * 2 + D * 4)
                + 2 * tn * 4                             # output row
                + 2 * tn * D * 4)                        # recon / cheese temporaries
    out = pl.pallas_call(
        _tail_kernel,
        out_shape=jax.ShapeDtypeStruct((B, 1, N), jnp.float32),
        grid_spec=pltpu.PrefetchScalarGridSpec(
            num_scalar_prefetch=0,
            grid=(B, N // tn),
            in_specs=[
                pl.BlockSpec((1, tn, R), lambda b, n: (b, n, 0)),     # coef tile
                pl.BlockSpec((1, D, R), lambda b, n: (b, 0, 0)),      # final bases
                pl.BlockSpec((1, tn, Cham), lambda b, n: (b, n, 0)),  # shortcut y tile
                pl.BlockSpec((D, D), lambda b, n: (0, 0)),            # cheese W
                pl.BlockSpec((1, D), lambda b, n: (0, 0)),            # cheese bias (folded BN)
                pl.BlockSpec((D, Cham), lambda b, n: (0, 0)),         # upper_bread W
                pl.BlockSpec((1, Cham), lambda b, n: (0, 0)),         # align W (transposed)
            ],
            out_specs=pl.BlockSpec((1, 1, tn), lambda b, n: (b, 0, n)),
        ),
        compiler_params=pltpu.CompilerParams(
            dimension_semantics=("parallel", "parallel"),
            vmem_limit_bytes=_vmem_limit(s3_bytes, cap)),
    )(coef, bases_out, y, wch_bf, bch, wub_bf, wal_bf)

    # (B, 1, N) is already channel-first; just fold N back to (H, W).
    return out.reshape(B, 1, H, W)


def init_params(key_params, key_bases, batch):
    """Deterministic synthetic parameters (shapes implied by the module)."""
    Cin = sum(ENC_EMBED_DIMS)
    Cham = CONFIG['ham_channels']
    D, R = CONFIG['MD_D'], CONFIG['MD_R']
    ks = jax.random.split(key_params, 6)

    def w(k, fan_in, shape):
        return jax.random.normal(k, shape, jnp.float32) / jnp.sqrt(jnp.float32(fan_in))

    wsq = w(ks[0], Cin, (Cin, Cham))              # squeeze (Conv2d 1x1, bias=False)
    wlb = w(ks[1], Cham, (Cham, D))               # lower_bread conv
    blb = 0.01 * jax.random.normal(ks[2], (1, D), jnp.float32)   # lower_bread bias
    wch = w(ks[3], D, (D, D))                     # cheese conv (BN folded, eval-init)
    bch = jnp.zeros((1, D), jnp.float32)          # folded BN shift at init = 0
    wub = w(ks[4], D, (D, Cham))                  # upper_bread conv (bias=False)
    wal = w(ks[5], Cham, (Cham, 1))               # align conv (bias=False)

    # torch.rand bases, L2-normalised along D (F.normalize(dim=1)); one per batch*S (S=1)
    bases = jax.random.uniform(key_bases, (batch, D, R), jnp.float32)
    bases = bases / jnp.sqrt(jnp.sum(bases * bases, axis=1, keepdims=True) + 1e-12)

    return bases, wsq, wlb, blb, wch, bch, wub, wal


if __name__ == "__main__":
    key = jax.random.PRNGKey(0)
    kf, kp, kb = jax.random.split(key, 3)

    B, H, W = 2, 16, 16
    strides = [1, 2, 4, 8]                         # features[0] is the largest map
    fkeys = jax.random.split(kf, len(ENC_EMBED_DIMS))
    features = [
        jax.random.normal(fkeys[i], (B, c, H // s, W // s), jnp.float32)
        for i, (c, s) in enumerate(zip(ENC_EMBED_DIMS, strides))
    ]

    params = init_params(kp, kb, B)
    out = ham_decoder_forward(features, params)
    out = jax.block_until_ready(out)
    assert out.shape == (B, 1, H, W), out.shape
    assert bool(jnp.all(jnp.isfinite(out)))
    print("KERNEL_OK")
</pallas_src>

<mosaic_0001>
module attributes {stable_mosaic.version = 11 : i64} {
  func.func @_squeeze_lower_kernel(%arg0: i32, %arg1: i32, %arg2: memref<1x256x1024xbf16, #tpu.memory_space<vmem>>, %arg3: memref<1024x128xbf16, #tpu.memory_space<vmem>>, %arg4: memref<128x128xbf16, #tpu.memory_space<vmem>>, %arg5: memref<1x128xf32, #tpu.memory_space<vmem>>, %arg6: memref<1x256x128xbf16, #tpu.memory_space<vmem>>, %arg7: memref<1x256x128xbf16, #tpu.memory_space<vmem>>) attributes {dimension_semantics = [#tpu.dimension_semantics<parallel>, #tpu.dimension_semantics<parallel>], iteration_bounds = array<i64: 2, 1>, scalar_prefetch = 0 : i64, scratch_operands = 0 : i64, tpu.core_type = #tpu.core_type<tc>, window_params = [{transform_indices = @transform_0, window_bounds = array<i64: 1, 256, 1024>}, {pipeline_mode = #tpu.pipeline_mode<synchronous>, transform_indices = @transform_1, window_bounds = array<i64: 1024, 128>}, {pipeline_mode = #tpu.pipeline_mode<synchronous>, transform_indices = @transform_2, window_bounds = array<i64: 128, 128>}, {pipeline_mode = #tpu.pipeline_mode<synchronous>, transform_indices = @transform_3, window_bounds = array<i64: 1, 128>}, {transform_indices = @transform_4, window_bounds = array<i64: 1, 256, 128>}, {transform_indices = @transform_5, window_bounds = array<i64: 1, 256, 128>}]} {
    %c0 = arith.constant 0 : index
    %c0_0 = arith.constant 0 : index
    %c0_1 = arith.constant 0 : index
    %0 = vector.load %arg2[%c0, %c0_0, %c0_1] : memref<1x256x1024xbf16, #tpu.memory_space<vmem>>, vector<1x256x1024xbf16>
    %1 = vector.shape_cast %0 : vector<1x256x1024xbf16> to vector<256x1024xbf16>
    %c0_2 = arith.constant 0 : index
    %c0_3 = arith.constant 0 : index
    %2 = vector.load %arg3[%c0_2, %c0_3] : memref<1024x128xbf16, #tpu.memory_space<vmem>>, vector<1024x128xbf16>
    %cst = arith.constant dense<0.000000e+00> : vector<256x128xf32>
    %3 = tpu.matmul %1, %2, %cst {dimension_numbers = #tpu.dot_dimension_numbers<[1], [0], [0], [1], [0, 0, 1, 1], [], []>} : vector<256x1024xbf16>, vector<1024x128xbf16>, vector<256x128xf32> -> vector<256x128xf32>
    %cst_4 = arith.constant 0.000000e+00 : f32
    %4 = vector.broadcast %cst_4 : f32 to vector<256x128xf32>
    %5 = arith.maximumf %3, %4 : vector<256x128xf32>
    %6 = arith.truncf %5 : vector<256x128xf32> to vector<256x128xbf16>
    %c0_5 = arith.constant 0 : index
    %c0_6 = arith.constant 0 : index
    %7 = vector.load %arg4[%c0_5, %c0_6] : memref<128x128xbf16, #tpu.memory_space<vmem>>, vector<128x128xbf16>
    %cst_7 = arith.constant dense<0.000000e+00> : vector<256x128xf32>
    %8 = tpu.matmul %6, %7, %cst_7 {dimension_numbers = #tpu.dot_dimension_numbers<[1], [0], [0], [1], [0, 0, 1, 1], [], []>} : vector<256x128xbf16>, vector<128x128xbf16>, vector<256x128xf32> -> vector<256x128xf32>
    %c0_8 = arith.constant 0 : index
    %c0_9 = arith.constant 0 : index
    %9 = vector.load %arg5[%c0_8, %c0_9] : memref<1x128xf32, #tpu.memory_space<vmem>>, vector<1x128xf32>
    %10 = vector.broadcast %9 : vector<1x128xf32> to vector<256x128xf32>
    %11 = arith.addf %8, %10 : vector<256x128xf32>
    %cst_10 = arith.constant 0.000000e+00 : f32
    %12 = vector.broadcast %cst_10 : f32 to vector<256x128xf32>
    %13 = arith.maximumf %11, %12 : vector<256x128xf32>
    %14 = arith.truncf %5 : vector<256x128xf32> to vector<256x128xbf16>
    %c0_11 = arith.constant 0 : index
    %c0_12 = arith.constant 0 : index
    %c0_13 = arith.constant 0 : index
    %15 = vector.load %arg6[%c0_11, %c0_12, %c0_13] : memref<1x256x128xbf16, #tpu.memory_space<vmem>>, vector<1x256x128xbf16>
    %16 = vector.shape_cast %15 : vector<1x256x128xbf16> to vector<256x128xbf16>
    %17 = vector.shape_cast %14 : vector<256x128xbf16> to vector<1x256x128xbf16>
    tpu.vector_store %arg6[%c0_11, %c0_12, %c0_13], %17 {strides = array<i32>} : memref<1x256x128xbf16, #tpu.memory_space<vmem>>, vector<1x256x128xbf16>,
    %18 = arith.truncf %13 : vector<256x128xf32> to vector<256x128xbf16>
    %c0_14 = arith.constant 0 : index
    %c0_15 = arith.constant 0 : index
    %c0_16 = arith.constant 0 : index
    %19 = vector.load %arg7[%c0_14, %c0_15, %c0_16] : memref<1x256x128xbf16, #tpu.memory_space<vmem>>, vector<1x256x128xbf16>
    %20 = vector.shape_cast %19 : vector<1x256x128xbf16> to vector<256x128xbf16>
    %21 = vector.shape_cast %18 : vector<256x128xbf16> to vector<1x256x128xbf16>
    tpu.vector_store %arg7[%c0_14, %c0_15, %c0_16], %21 {strides = array<i32>} : memref<1x256x128xbf16, #tpu.memory_space<vmem>>, vector<1x256x128xbf16>,
    return
  }
  func.func @transform_0(%arg0: i32, %arg1: i32) -> (i32, i32, i32) {
    %c0_i32 = arith.constant 0 : i32
    %c0_i32_0 = arith.constant 0 : i32
    return %arg0, %arg1, %c0_i32 : i32, i32, i32
  }
  func.func @transform_1(%arg0: i32, %arg1: i32) -> (i32, i32) {
    %c0_i32 = arith.constant 0 : i32
    %c0_i32_0 = arith.constant 0 : i32
    %c0_i32_1 = arith.constant 0 : i32
    return %c0_i32, %c0_i32_0 : i32, i32
  }
  func.func @transform_2(%arg0: i32, %arg1: i32) -> (i32, i32) {
    %c0_i32 = arith.constant 0 : i32
    %c0_i32_0 = arith.constant 0 : i32
    %c0_i32_1 = arith.constant 0 : i32
    return %c0_i32, %c0_i32_0 : i32, i32
  }
  func.func @transform_3(%arg0: i32, %arg1: i32) -> (i32, i32) {
    %c0_i32 = arith.constant 0 : i32
    %c0_i32_0 = arith.constant 0 : i32
    %c0_i32_1 = arith.constant 0 : i32
    return %c0_i32, %c0_i32_0 : i32, i32
  }
  func.func @transform_4(%arg0: i32, %arg1: i32) -> (i32, i32, i32) {
    %c0_i32 = arith.constant 0 : i32
    %c0_i32_0 = arith.constant 0 : i32
    return %arg0, %arg1, %c0_i32 : i32, i32, i32
  }
  func.func @transform_5(%arg0: i32, %arg1: i32) -> (i32, i32, i32) {
    %c0_i32 = arith.constant 0 : i32
    %c0_i32_0 = arith.constant 0 : i32
    return %arg0, %arg1, %c0_i32 : i32, i32, i32
  }
}

</mosaic_0001>

<llo_original>
// kernel: tpu_custom_call.1
$region0: #{tpu_custom_call.1}
  #allocation0 [shape = 'u32[]', space=smem, size = 0x4, offset = 0x4, fixed_abs, tag = 'smem constant byte address 0x4 - core index']
  #allocation1 [shape = 'u32[144,128]{1,0:T(1,128)}', space=vmem, size = 0x12000, scoped, tag = 'internal scratch']
  %s0 = inlined_call_operand.hbm [shape: bf16[2,256,1024], index: 0, kind: input, shape index: {}]
  %s1 = inlined_call_operand.hbm [shape: bf16[1024,128], index: 1, kind: input, shape index: {}]
  %s2 = inlined_call_operand.hbm [shape: bf16[128,128], index: 2, kind: input, shape index: {}]
  %s3 = inlined_call_operand.vmem [shape: f32[1,128], index: 3, kind: input, shape index: {}]
  %s4 = inlined_call_operand.hbm [shape: bf16[2,256,128], index: 4, kind: output, shape index: {0}]
  %s5 = inlined_call_operand.hbm [shape: bf16[2,256,128], index: 5, kind: output, shape index: {1}]
  %6 = xla_tuple %s4, %s5
  %s7 = sld [smem:[#allocation0]]
  $region69: #{tpu_custom_call.1} parent=0
    _
  %s9 = ssub.s32 1, %s7
  %s10 = scalar_select 0, %s9, %s7
  $region1: #{tpu_custom_call.1} parent=0
    #allocation2 [shape = 'u8[1048576]{0}', space=vmem, size = 0x100000, scoped, tag = 'input window, operand 0']
    #allocation3 [shape = 's32[2]{0}', space=sflag, size = 0x8, scoped, tag = 'scoped memory for tpu_custom_call.1']
    #allocation4 [shape = 's32[2]{0}', space=sflag, size = 0x8, scoped, tag = 'scoped memory for tpu_custom_call.1']
    #allocation5 [shape = 'u8[262144]{0}', space=vmem, size = 0x40000, scoped, tag = 'input window, operand 1, single buffered']
    #allocation6 [shape = 's32[1]{0}', space=sflag, size = 0x4, scoped, tag = 'scoped memory for tpu_custom_call.1']
    #allocation7 [shape = 'u8[32768]{0}', space=vmem, size = 0x8000, scoped, tag = 'input window, operand 2, single buffered']
    #allocation8 [shape = 'u8[131072]{0}', space=vmem, size = 0x20000, scoped, tag = 'output window, operand 0']
    #allocation9 [shape = 'u8[131072]{0}', space=vmem, size = 0x20000, scoped, tag = 'output window, operand 1']
    #allocation10 [shape = 's32[2]{0}', space=sflag, size = 0x8, scoped, tag = 'scoped memory for tpu_custom_call.1']
    %11 = vsyncpa [#allocation3], 0
    %s12 = scalar_lea.sflag [#allocation3], 1
    %13 = vsyncpa %s12, 0
    %14 = vsyncpa [#allocation6], 0
    %15 = vsyncpa [#allocation4], 0
    %s16 = scalar_lea.sflag [#allocation4], 1
    %17 = vsyncpa %s16, 0
    %18 = vsyncpa [#allocation10], 0
    %s19 = scalar_lea.sflag [#allocation10], 1
    %20 = vsyncpa %s19, 0
    loop: start=0, step=1, limit=4
    $region2: #{tpu_custom_call.1} parent=1 // loop_pre_header
      _
    $region3: #{tpu_custom_call.1} parent=1 // loop_header
      %s22 = sphi 0, %s26
      %p23 = scmp.ge.s32.totalorder %s22, 4
      %s29 = sphi 0, %s41
      %s30 = sphi 0, %s37
      %s31 = sphi 0, %s29
      %s32 = sphi 0, %s30
      %s33 = sphi 0, %s31
      %s34 = sphi 0, %s32
      %s46 = sphi 0, %s48
      %s49 = sphi 0, %s46
      %s50 = sphi 0, %s49
      %s66 = sphi 0, %s50
      %s70 = sphi 0, %s70
      %s72 = sphi 0, %s70
      %s73 = sphi 0, %s72
      %s87 = sphi 0, %s73
      %s91 = sphi 0, %s91
      %s93 = sphi 0, %s91
      %s94 = sphi 0, %s93
      %s108 = sphi 0, %s94
      %s112 = sphi 0, %s112
      %s114 = sphi 0, %s112
      %s115 = sphi 0, %s114
      %s129 = sphi 0, %s115
      %s137 = sphi 0, %s139
      %s140 = sphi 0, %s137
      %s141 = sphi 0, %s140
      %s157 = sphi 0, %s141
      %s165 = sphi 0, %s167
      %s168 = sphi 0, %s165
      %s169 = sphi 0, %s168
      %s185 = sphi 0, %s169
    $region4: #{tpu_custom_call.1} parent=1 // loop_header_branch
      %25 = sbr.rel (%p23) target = $region8
    $region5: #{tpu_custom_call.1} parent=1 // loop_body
      %s27 = ssub.s32 %s22, 1
      %s28 = ssub.s32 %s22, 2
      %s35 = sadd.s32 1, %s30
      %p36 = scmp.ge.s32.totalorder %s35, 1
      %s37 = scalar_select %p36, 0, %s35
      %s38 = sadd.s32 1, %s29
      %s39 = scalar_select %p36, %s38, %s29
      %p40 = scmp.ge.s32.totalorder %s39, 2
      %s41 = scalar_select %p40, 0, %s39
      %s42 = ssub.s32 %s29, %s41
      %s43 = ssub.s32 %s30, %s37
      %s44 = sor.u32 %s42, %s43
      %p45 = scmp.eq.s32.totalorder %s44, 0
      %s47 = sadd.s32 %s46, 1
      %s48 = scalar_select %p45, %s46, %s47
      %p51 = pneg %p45
      %p52 = scmp.eq.s32.totalorder %s22, 1
      %p53 = por %p51, %p52
      %p54 = scmp.ne.s32.totalorder %s46, %s49
      %p55 = scmp.eq.s32.totalorder %s22, 0
      %p56 = por %p54, %p55
      %p57 = scmp.ne.s32.totalorder %s46, %s49
      %p58 = scmp.eq.s32.totalorder %s27, 1
      %p59 = por %p57, %p58
      %p60 = scmp.ne.s32.totalorder %s49, %s50
      %p61 = scmp.eq.s32.totalorder %s27, 0
      %p62 = por %p60, %p61
      %p63 = scmp.ne.s32.totalorder %s49, %s50
      %p64 = scmp.eq.s32.totalorder %s28, 1
      %p65 = por %p63, %p64
      %p67 = scmp.ne.s32.totalorder %s50, %s66
      %p68 = scmp.eq.s32.totalorder %s28, 0
      %p69 = por %p67, %p68
      %s71 = sadd.s32 %s70, 1
      %p74 = scmp.eq.s32.totalorder %s22, 1
      %p75 = scmp.ne.s32.totalorder %s70, %s72
      %p76 = scmp.eq.s32.totalorder %s22, 0
      %p77 = por %p75, %p76
      %p78 = scmp.ne.s32.totalorder %s70, %s72
      %p79 = scmp.eq.s32.totalorder %s27, 1
      %p80 = por %p78, %p79
      %p81 = scmp.ne.s32.totalorder %s72, %s73
      %p82 = scmp.eq.s32.totalorder %s27, 0
      %p83 = por %p81, %p82
      %p84 = scmp.ne.s32.totalorder %s72, %s73
      %p85 = scmp.eq.s32.totalorder %s28, 1
      %p86 = por %p84, %p85
      %p88 = scmp.ne.s32.totalorder %s73, %s87
      %p89 = scmp.eq.s32.totalorder %s28, 0
      %p90 = por %p88, %p89
      %s92 = sadd.s32 %s91, 1
      %p95 = scmp.eq.s32.totalorder %s22, 1
      %p96 = scmp.ne.s32.totalorder %s91, %s93
      %p97 = scmp.eq.s32.totalorder %s22, 0
      %p98 = por %p96, %p97
      %p99 = scmp.ne.s32.totalorder %s91, %s93
      %p100 = scmp.eq.s32.totalorder %s27, 1
      %p101 = por %p99, %p100
      %p102 = scmp.ne.s32.totalorder %s93, %s94
      %p103 = scmp.eq.s32.totalorder %s27, 0
      %p104 = por %p102, %p103
      %p105 = scmp.ne.s32.totalorder %s93, %s94
      %p106 = scmp.eq.s32.totalorder %s28, 1
      %p107 = por %p105, %p106
      %p109 = scmp.ne.s32.totalorder %s94, %s108
      %p110 = scmp.eq.s32.totalorder %s28, 0
      %p111 = por %p109, %p110
      %s113 = sadd.s32 %s112, 1
      %p116 = scmp.eq.s32.totalorder %s22, 1
      %p117 = scmp.ne.s32.totalorder %s112, %s114
      %p118 = scmp.eq.s32.totalorder %s22, 0
      %p119 = por %p117, %p118
      %p120 = scmp.ne.s32.totalorder %s112, %s114
      %p121 = scmp.eq.s32.totalorder %s27, 1
      %p122 = por %p120, %p121
      %p123 = scmp.ne.s32.totalorder %s114, %s115
      %p124 = scmp.eq.s32.totalorder %s27, 0
      %p125 = por %p123, %p124
      %p126 = scmp.ne.s32.totalorder %s114, %s115
      %p127 = scmp.eq.s32.totalorder %s28, 1
      %p128 = por %p126, %p127
      %p130 = scmp.ne.s32.totalorder %s115, %s129
      %p131 = scmp.eq.s32.totalorder %s28, 0
      %p132 = por %p130, %p131
      %s133 = ssub.s32 %s29, %s41
      %s134 = ssub.s32 %s30, %s37
      %s135 = sor.u32 %s133, %s134
      %p136 = scmp.eq.s32.totalorder %s135, 0
      %s138 = sadd.s32 %s137, 1
      %s139 = scalar_select %p136, %s137, %s138
      %p142 = pneg %p136
      %p143 = scmp.eq.s32.totalorder %s22, 1
      %p144 = por %p142, %p143
      %p145 = scmp.ne.s32.totalorder %s137, %s140
      %p146 = scmp.eq.s32.totalorder %s22, 0
      %p147 = por %p145, %p146
      %p148 = scmp.ne.s32.totalorder %s137, %s140
      %p149 = scmp.eq.s32.totalorder %s27, 1
      %p150 = por %p148, %p149
      %p151 = scmp.ne.s32.totalorder %s140, %s141
      %p152 = scmp.eq.s32.totalorder %s27, 0
      %p153 = por %p151, %p152
      %p154 = scmp.ne.s32.totalorder %s140, %s141
      %p155 = scmp.eq.s32.totalorder %s28, 1
      %p156 = por %p154, %p155
      %p158 = scmp.ne.s32.totalorder %s141, %s157
      %p159 = scmp.eq.s32.totalorder %s28, 0
      %p160 = por %p158, %p159
      %s161 = ssub.s32 %s29, %s41
      %s162 = ssub.s32 %s30, %s37
      %s163 = sor.u32 %s161, %s162
      %p164 = scmp.eq.s32.totalorder %s163, 0
      %s166 = sadd.s32 %s165, 1
      %s167 = scalar_select %p164, %s165, %s166
      %p170 = pneg %p164
      %p171 = scmp.eq.s32.totalorder %s22, 1
      %p172 = por %p170, %p171
      %p173 = scmp.ne.s32.totalorder %s165, %s168
      %p174 = scmp.eq.s32.totalorder %s22, 0
      %p175 = por %p173, %p174
      %p176 = scmp.ne.s32.totalorder %s165, %s168
      %p177 = scmp.eq.s32.totalorder %s27, 1
      %p178 = por %p176, %p177
      %p179 = scmp.ne.s32.totalorder %s168, %s169
      %p180 = scmp.eq.s32.totalorder %s27, 0
      %p181 = por %p179, %p180
      %p182 = scmp.ne.s32.totalorder %s168, %s169
      %p183 = scmp.eq.s32.totalorder %s28, 1
      %p184 = por %p182, %p183
      %p186 = scmp.ne.s32.totalorder %s169, %s185
      %p187 = scmp.eq.s32.totalorder %s28, 0
      %p188 = por %p186, %p187
      %p189 = scmp.le.s32.totalorder 1, %s22
      %p190 = scmp.lt.s32.totalorder %s22, 3
      %p191 = pnand %p189, %p190
      %p192 = pneg %p191
      // Predicated region
      $region9: #{tpu_custom_call.1} parent=5 // pred_check
        _
      $region10: #{tpu_custom_call.1} parent=5 // pred_check_branch
        %194 = sbr.rel (%p191) target = $region12
      $region11: #{tpu_custom_call.1} parent=5 // pred_region
        %s195 = ssub.s32 %s22, 1
        // Predicated region
        $region13: #{tpu_custom_call.1} parent=11 // pred_check
          %p196 = pneg %p83
        $region14: #{tpu_custom_call.1} parent=11 // pred_check_branch
          %198 = sbr.rel (%p196) target = $region16
        $region15: #{tpu_custom_call.1} parent=11 // pred_region
          %s200 = ssub.s32 8192, 8192
          %201 = vsyncadd [#allocation6], %s200
          %s202 = sshll.u32 [#allocation5], 4
          %s203 = int_to_ptr.vmem [resolvable:$true] %s202
          %208 = dma.hbm_to_vmem [thread:$0]  %s1, 8192, %s203, [#allocation6], 64, 64, 4
        $region16: #{tpu_custom_call.1} parent=11 // pred_fallthru
          _
        // Predicated region
        $region17: #{tpu_custom_call.1} parent=11 // pred_check
          %p209 = pneg %p104
        $region18: #{tpu_custom_call.1} parent=11 // pred_check_branch
          %211 = sbr.rel (%p209) target = $region20
        $region19: #{tpu_custom_call.1} parent=11 // pred_region
          %s213 = ssub.s32 1024, 1024
          %214 = vsyncadd [#allocation6], %s213
          %s215 = sshll.u32 [#allocation7], 4
          %s216 = int_to_ptr.vmem [resolvable:$true] %s215
          %221 = dma.hbm_to_vmem [thread:$0]  %s2, 1024, %s216, [#allocation6], 64, 64, 4
        $region20: #{tpu_custom_call.1} parent=11 // pred_fallthru
          _
        // Predicated region
        $region21: #{tpu_custom_call.1} parent=11 // pred_check
          %p222 = pneg %p125
        $region22: #{tpu_custom_call.1} parent=11 // pred_check_branch
          %224 = sbr.rel (%p222) target = $region24
        $region23: #{tpu_custom_call.1} parent=11 // pred_region
          _
        $region24: #{tpu_custom_call.1} parent=11 // pred_fallthru
          _
      $region12: #{tpu_custom_call.1} parent=5 // pred_fallthru
        _
      %p225 = scmp.lt.s32.totalorder %s22, 2
      // Predicated region
      $region25: #{tpu_custom_call.1} parent=5 // pred_check
        %p226 = pneg %p225
      $region26: #{tpu_custom_call.1} parent=5 // pred_check_branch
        %228 = sbr.rel (%p226) target = $region28
      $region27: #{tpu_custom_call.1} parent=5 // pred_region
        // Predicated region
        $region29: #{tpu_custom_call.1} parent=27 // pred_check
          %p229 = pneg %p56
        $region30: #{tpu_custom_call.1} parent=27 // pred_check_branch
          %231 = sbr.rel (%p229) target = $region32
        $region31: #{tpu_custom_call.1} parent=27 // pred_region
          %s232 = sand.u32 %s46, 1
          %s233 = scalar_lea.sflag [#allocation3], %s232
          %s234 = sand.u32 %s46, 1
          %s235 = smul.addr %s234, 1024
          %s236 = scalar_lea.vmem [#allocation2], %s235
          %s237 = smul.u32 32, %s30
          %s239 = ssub.s32 16384, 16384
          %240 = vsyncadd %s233, %s239
          %s241 = smul.addr %s237, 8
          %s242 = smul.addr %s29, 256
          %s243 = sadd.s32 %s241, %s242
          %s244 = smul.addr %s243, 64
          %s245 = scalar_lea.hbm %s0, %s244
          %s246 = sshll.u32 %s236, 4
          %s247 = int_to_ptr.vmem [resolvable:$true] %s246
          %252 = dma.hbm_to_vmem [thread:$0]  %s245, 16384, %s247, %s233, 512, 512, 32
        $region32: #{tpu_custom_call.1} parent=27 // pred_fallthru
          _
      $region28: #{tpu_custom_call.1} parent=5 // pred_fallthru
        _
      %p253 = scmp.le.s32.totalorder 1, %s22
      %p254 = scmp.lt.s32.totalorder %s22, 3
      %p255 = pnand %p253, %p254
      %p256 = pneg %p255
      // Predicated region
      $region33: #{tpu_custom_call.1} parent=5 // pred_check
        _
      $region34: #{tpu_custom_call.1} parent=5 // pred_check_branch
        %258 = sbr.rel (%p255) target = $region36
      $region35: #{tpu_custom_call.1} parent=5 // pred_region
        %s259 = ssub.s32 %s22, 1
        %s260 = sand.u32 %s49, 1
        %s261 = scalar_lea.sflag [#allocation3], %s260
        %s262 = sand.u32 %s49, 1
        %s263 = smul.addr %s262, 1024
        %s264 = scalar_lea.vmem [#allocation2], %s263
        // Predicated region
        $region37: #{tpu_custom_call.1} parent=35 // pred_check
          %p265 = pneg %p62
        $region38: #{tpu_custom_call.1} parent=35 // pred_check_branch
          %267 = sbr.rel (%p265) target = $region40
        $region39: #{tpu_custom_call.1} parent=35 // pred_region
          %268 = dma.done %s261, 16384
        $region40: #{tpu_custom_call.1} parent=35 // pred_fallthru
          _
        // Predicated region
        $region41: #{tpu_custom_call.1} parent=35 // pred_check
          %p269 = pneg %p83
        $region42: #{tpu_custom_call.1} parent=35 // pred_check_branch
          %271 = sbr.rel (%p269) target = $region44
        $region43: #{tpu_custom_call.1} parent=35 // pred_region
          %272 = dma.done [#allocation6], 8192
        $region44: #{tpu_custom_call.1} parent=35 // pred_fallthru
          _
        // Predicated region
        $region45: #{tpu_custom_call.1} parent=35 // pred_check
          %p273 = pneg %p104
        $region46: #{tpu_custom_call.1} parent=35 // pred_check_branch
          %275 = sbr.rel (%p273) target = $region48
        $region47: #{tpu_custom_call.1} parent=35 // pred_region
          %276 = dma.done [#allocation6], 1024
        $region48: #{tpu_custom_call.1} parent=35 // pred_fallthru
          _
        %s277 = sand.u32 %s49, 1
        %s278 = scalar_lea.sflag [#allocation3], %s277
        %s279 = sand.u32 %s49, 1
        %s280 = smul.addr %s279, 1024
        %s281 = scalar_lea.vmem [#allocation2], %s280
        %p282 = pneg %p62
        %p283 = pneg %p59
        %p284 = pneg %p83
        %p285 = pneg %p80
        %p286 = pneg %p104
        %p287 = pneg %p101
        %p288 = pneg %p125
        %p289 = pneg %p122
        %p290 = pneg %p153
        %p291 = pneg %p150
        %s292 = sand.u32 %s140, 1
        %s293 = scalar_lea.sflag [#allocation4], %s292
        %s294 = sand.u32 %s140, 1
        %s295 = smul.addr %s294, 128
        %s296 = scalar_lea.vmem [#allocation8], %s295
        %p297 = pneg %p181
        %p298 = pneg %p178
        %s299 = sand.u32 %s168, 1
        %s300 = scalar_lea.sflag [#allocation10], %s299
        %s301 = sand.u32 %s168, 1
        %s302 = smul.addr %s301, 128
        %s303 = scalar_lea.vmem [#allocation9], %s302
        %s304 = smul.u32 32, %s32
        %s305 = smul.u32 32, %s32
        %s306 = smul.u32 32, %s32
        %v308 = vld [vmem:[%s264] sm:$0xff]
        %v309 = vld [vmem:[%s264 + $0x8] sm:$0xff]
        %v310 = vld [vmem:[%s264 + $0x10] sm:$0xff]
        %v311 = vld [vmem:[%s264 + $0x18] sm:$0xff]
        %v312 = vld [vmem:[%s264 + $0x20] sm:$0xff]
        %v313 = vld [vmem:[%s264 + $0x28] sm:$0xff]
        %v314 = vld [vmem:[%s264 + $0x30] sm:$0xff]
        %v315 = vld [vmem:[%s264 + $0x38] sm:$0xff]
        %v316 = vld [vmem:[%s264 + $0x40] sm:$0xff]
        %v317 = vld [vmem:[%s264 + $0x48] sm:$0xff]
        %v318 = vld [vmem:[%s264 + $0x50] sm:$0xff]
        %v319 = vld [vmem:[%s264 + $0x58] sm:$0xff]
        %v320 = vld [vmem:[%s264 + $0x60] sm:$0xff]
        %v321 = vld [vmem:[%s264 + $0x68] sm:$0xff]
        %v322 = vld [vmem:[%s264 + $0x70] sm:$0xff]
        %v323 = vld [vmem:[%s264 + $0x78] sm:$0xff]
        %v324 = vld [vmem:[%s264 + $0x80] sm:$0xff]
        %v325 = vld [vmem:[%s264 + $0x88] sm:$0xff]
        %v326 = vld [vmem:[%s264 + $0x90] sm:$0xff]
        %v327 = vld [vmem:[%s264 + $0x98] sm:$0xff]
        %v328 = vld [vmem:[%s264 + $0xa0] sm:$0xff]
        %v329 = vld [vmem:[%s264 + $0xa8] sm:$0xff]
        %v330 = vld [vmem:[%s264 + $0xb0] sm:$0xff]
        %v331 = vld [vmem:[%s264 + $0xb8] sm:$0xff]
        %v332 = vld [vmem:[%s264 + $0xc0] sm:$0xff]
        %v333 = vld [vmem:[%s264 + $0xc8] sm:$0xff]
        %v334 = vld [vmem:[%s264 + $0xd0] sm:$0xff]
        %v335 = vld [vmem:[%s264 + $0xd8] sm:$0xff]
        %v336 = vld [vmem:[%s264 + $0xe0] sm:$0xff]
        %v337 = vld [vmem:[%s264 + $0xe8] sm:$0xff]
        %v338 = vld [vmem:[%s264 + $0xf0] sm:$0xff]
        %v339 = vld [vmem:[%s264 + $0xf8] sm:$0xff]
        %v340 = vld [vmem:[%s264 + $0x100] sm:$0xff]
        %v341 = vld [vmem:[%s264 + $0x108] sm:$0xff]
        %v342 = vld [vmem:[%s264 + $0x110] sm:$0xff]
        %v343 = vld [vmem:[%s264 + $0x118] sm:$0xff]
        %v344 = vld [vmem:[%s264 + $0x120] sm:$0xff]
        %v345 = vld [vmem:[%s264 + $0x128] sm:$0xff]
        %v346 = vld [vmem:[%s264 + $0x130] sm:$0xff]
        %v347 = vld [vmem:[%s264 + $0x138] sm:$0xff]
        %v348 = vld [vmem:[%s264 + $0x140] sm:$0xff]
        %v349 = vld [vmem:[%s264 + $0x148] sm:$0xff]
        %v350 = vld [vmem:[%s264 + $0x150] sm:$0xff]
        %v351 = vld [vmem:[%s264 + $0x158] sm:$0xff]
        %v352 = vld [vmem:[%s264 + $0x160] sm:$0xff]
        %v353 = vld [vmem:[%s264 + $0x168] sm:$0xff]
        %v354 = vld [vmem:[%s264 + $0x170] sm:$0xff]
        %v355 = vld [vmem:[%s264 + $0x178] sm:$0xff]
        %v356 = vld [vmem:[%s264 + $0x180] sm:$0xff]
        %v357 = vld [vmem:[%s264 + $0x188] sm:$0xff]
        %v358 = vld [vmem:[%s264 + $0x190] sm:$0xff]
        %v359 = vld [vmem:[%s264 + $0x198] sm:$0xff]
        %v360 = vld [vmem:[%s264 + $0x1a0] sm:$0xff]
        %v361 = vld [vmem:[%s264 + $0x1a8] sm:$0xff]
        %v362 = vld [vmem:[%s264 + $0x1b0] sm:$0xff]
        %v363 = vld [vmem:[%s264 + $0x1b8] sm:$0xff]
        %v364 = vld [vmem:[%s264 + $0x1c0] sm:$0xff]
        %v365 = vld [vmem:[%s264 + $0x1c8] sm:$0xff]
        %v366 = vld [vmem:[%s264 + $0x1d0] sm:$0xff]
        %v367 = vld [vmem:[%s264 + $0x1d8] sm:$0xff]
        %v368 = vld [vmem:[%s264 + $0x1e0] sm:$0xff]
        %v369 = vld [vmem:[%s264 + $0x1e8] sm:$0xff]
        %v370 = vld [vmem:[%s264 + $0x1f0] sm:$0xff]
        %v371 = vld [vmem:[%s264 + $0x1f8] sm:$0xff]
        %v372 = vld [vmem:[%s264 + $0x200] sm:$0xff]
        %v373 = vld [vmem:[%s264 + $0x208] sm:$0xff]
        %v374 = vld [vmem:[%s264 + $0x210] sm:$0xff]
        %v375 = vld [vmem:[%s264 + $0x218] sm:$0xff]
        %v376 = vld [vmem:[%s264 + $0x220] sm:$0xff]
        %v377 = vld [vmem:[%s264 + $0x228] sm:$0xff]
        %v378 = vld [vmem:[%s264 + $0x230] sm:$0xff]
        %v379 = vld [vmem:[%s264 + $0x238] sm:$0xff]
        %v380 = vld [vmem:[%s264 + $0x240] sm:$0xff]
        %v381 = vld [vmem:[%s264 + $0x248] sm:$0xff]
        %v382 = vld [vmem:[%s264 + $0x250] sm:$0xff]
        %v383 = vld [vmem:[%s264 + $0x258] sm:$0xff]
        %v384 = vld [vmem:[%s264 + $0x260] sm:$0xff]
        %v385 = vld [vmem:[%s264 + $0x268] sm:$0xff]
        %v386 = vld [vmem:[%s264 + $0x270] sm:$0xff]
        %v387 = vld [vmem:[%s264 + $0x278] sm:$0xff]
        %v388 = vld [vmem:[%s264 + $0x280] sm:$0xff]
        %v389 = vld [vmem:[%s264 + $0x288] sm:$0xff]
        %v390 = vld [vmem:[%s264 + $0x290] sm:$0xff]
        %v391 = vld [vmem:[%s264 + $0x298] sm:$0xff]
        %v392 = vld [vmem:[%s264 + $0x2a0] sm:$0xff]
        %v393 = vld [vmem:[%s264 + $0x2a8] sm:$0xff]
        %v394 = vld [vmem:[%s264 + $0x2b0] sm:$0xff]
        %v395 = vld [vmem:[%s264 + $0x2b8] sm:$0xff]
        %v396 = vld [vmem:[%s264 + $0x2c0] sm:$0xff]
        %v397 = vld [vmem:[%s264 + $0x2c8] sm:$0xff]
        %v398 = vld [vmem:[%s264 + $0x2d0] sm:$0xff]
        %v399 = vld [vmem:[%s264 + $0x2d8] sm:$0xff]
        %v400 = vld [vmem:[%s264 + $0x2e0] sm:$0xff]
        %v401 = vld [vmem:[%s264 + $0x2e8] sm:$0xff]
        %v402 = vld [vmem:[%s264 + $0x2f0] sm:$0xff]
        %v403 = vld [vmem:[%s264 + $0x2f8] sm:$0xff]
        %v404 = vld [vmem:[%s264 + $0x300] sm:$0xff]
        %v405 = vld [vmem:[%s264 + $0x308] sm:$0xff]
        %v406 = vld [vmem:[%s264 + $0x310] sm:$0xff]
        %v407 = vld [vmem:[%s264 + $0x318] sm:$0xff]
        %v408 = vld [vmem:[%s264 + $0x320] sm:$0xff]
        %v409 = vld [vmem:[%s264 + $0x328] sm:$0xff]
        %v410 = vld [vmem:[%s264 + $0x330] sm:$0xff]
        %v411 = vld [vmem:[%s264 + $0x338] sm:$0xff]
        %v412 = vld [vmem:[%s264 + $0x340] sm:$0xff]
        %v413 = vld [vmem:[%s264 + $0x348] sm:$0xff]
        %v414 = vld [vmem:[%s264 + $0x350] sm:$0xff]
        %v415 = vld [vmem:[%s264 + $0x358] sm:$0xff]
        %v416 = vld [vmem:[%s264 + $0x360] sm:$0xff]
        %v417 = vld [vmem:[%s264 + $0x368] sm:$0xff]
        %v418 = vld [vmem:[%s264 + $0x370] sm:$0xff]
        %v419 = vld [vmem:[%s264 + $0x378] sm:$0xff]
        %v420 = vld [vmem:[%s264 + $0x380] sm:$0xff]
        %v421 = vld [vmem:[%s264 + $0x388] sm:$0xff]
        %v422 = vld [vmem:[%s264 + $0x390] sm:$0xff]
        %v423 = vld [vmem:[%s264 + $0x398] sm:$0xff]
        %v424 = vld [vmem:[%s264 + $0x3a0] sm:$0xff]
        %v425 = vld [vmem:[%s264 + $0x3a8] sm:$0xff]
        %v426 = vld [vmem:[%s264 + $0x3b0] sm:$0xff]
        %v427 = vld [vmem:[%s264 + $0x3b8] sm:$0xff]
        %v428 = vld [vmem:[%s264 + $0x3c0] sm:$0xff]
        %v429 = vld [vmem:[%s264 + $0x3c8] sm:$0xff]
        %v430 = vld [vmem:[%s264 + $0x3d0] sm:$0xff]
        %v431 = vld [vmem:[%s264 + $0x3d8] sm:$0xff]
        %v432 = vld [vmem:[%s264 + $0x3e0] sm:$0xff]
        %v433 = vld [vmem:[%s264 + $0x3e8] sm:$0xff]
        %v434 = vld [vmem:[%s264 + $0x3f0] sm:$0xff]
        %v435 = vld [vmem:[%s264 + $0x3f8] sm:$0xff]
        %v436 = vld [vmem:[#allocation5] sm:$0xf]
        %v437 = vld [vmem:[#allocation5 + $0x4] sm:$0xf]
        %v438 = vld [vmem:[#allocation5 + $0x8] sm:$0xf]
        %v439 = vld [vmem:[#allocation5 + $0xc] sm:$0xf]
        %v440 = vld [vmem:[#allocation5 + $0x10] sm:$0xf]
        %v441 = vld [vmem:[#allocation5 + $0x14] sm:$0xf]
        %v442 = vld [vmem:[#allocation5 + $0x18] sm:$0xf]
        %v443 = vld [vmem:[#allocation5 + $0x1c] sm:$0xf]
        %v444 = vld [vmem:[#allocation5 + $0x20] sm:$0xf]
        %v445 = vld [vmem:[#allocation5 + $0x24] sm:$0xf]
        %v446 = vld [vmem:[#allocation5 + $0x28] sm:$0xf]
        %v447 = vld [vmem:[#allocation5 + $0x2c] sm:$0xf]
        %v448 = vld [vmem:[#allocation5 + $0x30] sm:$0xf]
        %v449 = vld [vmem:[#allocation5 + $0x34] sm:$0xf]
        %v450 = vld [vmem:[#allocation5 + $0x38] sm:$0xf]
        %v451 = vld [vmem:[#allocation5 + $0x3c] sm:$0xf]
        %v452 = vld [vmem:[#allocation5 + $0x40] sm:$0xf]
        %v453 = vld [vmem:[#allocation5 + $0x44] sm:$0xf]
        %v454 = vld [vmem:[#allocation5 + $0x48] sm:$0xf]
        %v455 = vld [vmem:[#allocation5 + $0x4c] sm:$0xf]
        %v456 = vld [vmem:[#allocation5 + $0x50] sm:$0xf]
        %v457 = vld [vmem:[#allocation5 + $0x54] sm:$0xf]
        %v458 = vld [vmem:[#allocation5 + $0x58] sm:$0xf]
        %v459 = vld [vmem:[#allocation5 + $0x5c] sm:$0xf]
        %v460 = vld [vmem:[#allocation5 + $0x60] sm:$0xf]
        %v461 = vld [vmem:[#allocation5 + $0x64] sm:$0xf]
        %v462 = vld [vmem:[#allocation5 + $0x68] sm:$0xf]
        %v463 = vld [vmem:[#allocation5 + $0x6c] sm:$0xf]
        %v464 = vld [vmem:[#allocation5 + $0x70] sm:$0xf]
        %v465 = vld [vmem:[#allocation5 + $0x74] sm:$0xf]
        %v466 = vld [vmem:[#allocation5 + $0x78] sm:$0xf]
        %v467 = vld [vmem:[#allocation5 + $0x7c] sm:$0xf]
        %v468 = vld [vmem:[#allocation5 + $0x80] sm:$0xf]
        %v469 = vld [vmem:[#allocation5 + $0x84] sm:$0xf]
        %v470 = vld [vmem:[#allocation5 + $0x88] sm:$0xf]
        %v471 = vld [vmem:[#allocation5 + $0x8c] sm:$0xf]
        %v472 = vld [vmem:[#allocation5 + $0x90] sm:$0xf]
        %v473 = vld [vmem:[#allocation5 + $0x94] sm:$0xf]
        %v474 = vld [vmem:[#allocation5 + $0x98] sm:$0xf]
        %v475 = vld [vmem:[#allocation5 + $0x9c] sm:$0xf]
        %v476 = vld [vmem:[#allocation5 + $0xa0] sm:$0xf]
        %v477 = vld [vmem:[#allocation5 + $0xa4] sm:$0xf]
        %v478 = vld [vmem:[#allocation5 + $0xa8] sm:$0xf]
        %v479 = vld [vmem:[#allocation5 + $0xac] sm:$0xf]
        %v480 = vld [vmem:[#allocation5 + $0xb0] sm:$0xf]
        %v481 = vld [vmem:[#allocation5 + $0xb4] sm:$0xf]
        %v482 = vld [vmem:[#allocation5 + $0xb8] sm:$0xf]
        %v483 = vld [vmem:[#allocation5 + $0xbc] sm:$0xf]
        %v484 = vld [vmem:[#allocation5 + $0xc0] sm:$0xf]
        %v485 = vld [vmem:[#allocation5 + $0xc4] sm:$0xf]
        %v486 = vld [vmem:[#allocation5 + $0xc8] sm:$0xf]
        %v487 = vld [vmem:[#allocation5 + $0xcc] sm:$0xf]
        %v488 = vld [vmem:[#allocation5 + $0xd0] sm:$0xf]
        %v489 = vld [vmem:[#allocation5 + $0xd4] sm:$0xf]
        %v490 = vld [vmem:[#allocation5 + $0xd8] sm:$0xf]
        %v491 = vld [vmem:[#allocation5 + $0xdc] sm:$0xf]
        %v492 = vld [vmem:[#allocation5 + $0xe0] sm:$0xf]
        %v493 = vld [vmem:[#allocation5 + $0xe4] sm:$0xf]
        %v494 = vld [vmem:[#allocation5 + $0xe8] sm:$0xf]
        %v495 = vld [vmem:[#allocation5 + $0xec] sm:$0xf]
        %v496 = vld [vmem:[#allocation5 + $0xf0] sm:$0xf]
        %v497 = vld [vmem:[#allocation5 + $0xf4] sm:$0xf]
        %v498 = vld [vmem:[#allocation5 + $0xf8] sm:$0xf]
        %v499 = vld [vmem:[#allocation5 + $0xfc] sm:$0xf]
        %v500 = vld [vmem:[#allocation5 + $0x100] sm:$0xf]
        %v501 = vld [vmem:[#allocation5 + $0x104] sm:$0xf]
        %v502 = vld [vmem:[#allocation5 + $0x108] sm:$0xf]
        %v503 = vld [vmem:[#allocation5 + $0x10c] sm:$0xf]
        %v504 = vld [vmem:[#allocation5 + $0x110] sm:$0xf]
        %v505 = vld [vmem:[#allocation5 + $0x114] sm:$0xf]
        %v506 = vld [vmem:[#allocation5 + $0x118] sm:$0xf]
        %v507 = vld [vmem:[#allocation5 + $0x11c] sm:$0xf]
        %v508 = vld [vmem:[#allocation5 + $0x120] sm:$0xf]
        %v509 = vld [vmem:[#allocation5 + $0x124] sm:$0xf]
        %v510 = vld [vmem:[#allocation5 + $0x128] sm:$0xf]
        %v511 = vld [vmem:[#allocation5 + $0x12c] sm:$0xf]
        %v512 = vld [vmem:[#allocation5 + $0x130] sm:$0xf]
        %v513 = vld [vmem:[#allocation5 + $0x134] sm:$0xf]
        %v514 = vld [vmem:[#allocation5 + $0x138] sm:$0xf]
        %v515 = vld [vmem:[#allocation5 + $0x13c] sm:$0xf]
        %v516 = vld [vmem:[#allocation5 + $0x140] sm:$0xf]
        %v517 = vld [vmem:[#allocation5 + $0x144] sm:$0xf]
        %v518 = vld [vmem:[#allocation5 + $0x148] sm:$0xf]
        %v519 = vld [vmem:[#allocation5 + $0x14c] sm:$0xf]
        %v520 = vld [vmem:[#allocation5 + $0x150] sm:$0xf]
        %v521 = vld [vmem:[#allocation5 + $0x154] sm:$0xf]
        %v522 = vld [vmem:[#allocation5 + $0x158] sm:$0xf]
        %v523 = vld [vmem:[#allocation5 + $0x15c] sm:$0xf]
        %v524 = vld [vmem:[#allocation5 + $0x160] sm:$0xf]
        %v525 = vld [vmem:[#allocation5 + $0x164] sm:$0xf]
        %v526 = vld [vmem:[#allocation5 + $0x168] sm:$0xf]
        %v527 = vld [vmem:[#allocation5 + $0x16c] sm:$0xf]
        %v528 = vld [vmem:[#allocation5 + $0x170] sm:$0xf]
        %v529 = vld [vmem:[#allocation5 + $0x174] sm:$0xf]
        %v530 = vld [vmem:[#allocation5 + $0x178] sm:$0xf]
        %v531 = vld [vmem:[#allocation5 + $0x17c] sm:$0xf]
        %v532 = vld [vmem:[#allocation5 + $0x180] sm:$0xf]
        %v533 = vld [vmem:[#allocation5 + $0x184] sm:$0xf]
        %v534 = vld [vmem:[#allocation5 + $0x188] sm:$0xf]
        %v535 = vld [vmem:[#allocation5 + $0x18c] sm:$0xf]
        %v536 = vld [vmem:[#allocation5 + $0x190] sm:$0xf]
        %v537 = vld [vmem:[#allocation5 + $0x194] sm:$0xf]
        %v538 = vld [vmem:[#allocation5 + $0x198] sm:$0xf]
        %v539 = vld [vmem:[#allocation5 + $0x19c] sm:$0xf]
        %v540 = vld [vmem:[#allocation5 + $0x1a0] sm:$0xf]
        %v541 = vld [vmem:[#allocation5 + $0x1a4] sm:$0xf]
        %v542 = vld [vmem:[#allocation5 + $0x1a8] sm:$0xf]
        %v543 = vld [vmem:[#allocation5 + $0x1ac] sm:$0xf]
        %v544 = vld [vmem:[#allocation5 + $0x1b0] sm:$0xf]
        %v545 = vld [vmem:[#allocation5 + $0x1b4] sm:$0xf]
        %v546 = vld [vmem:[#allocation5 + $0x1b8] sm:$0xf]
        %v547 = vld [vmem:[#allocation5 + $0x1bc] sm:$0xf]
        %v548 = vld [vmem:[#allocation5 + $0x1c0] sm:$0xf]
        %v549 = vld [vmem:[#allocation5 + $0x1c4] sm:$0xf]
        %v550 = vld [vmem:[#allocation5 + $0x1c8] sm:$0xf]
        %v551 = vld [vmem:[#allocation5 + $0x1cc] sm:$0xf]
        %v552 = vld [vmem:[#allocation5 + $0x1d0] sm:$0xf]
        %v553 = vld [vmem:[#allocation5 + $0x1d4] sm:$0xf]
        %v554 = vld [vmem:[#allocation5 + $0x1d8] sm:$0xf]
        %v555 = vld [vmem:[#allocation5 + $0x1dc] sm:$0xf]
        %v556 = vld [vmem:[#allocation5 + $0x1e0] sm:$0xf]
        %v557 = vld [vmem:[#allocation5 + $0x1e4] sm:$0xf]
        %v558 = vld [vmem:[#allocation5 + $0x1e8] sm:$0xf]
        %v559 = vld [vmem:[#allocation5 + $0x1ec] sm:$0xf]
        %v560 = vld [vmem:[#allocation5 + $0x1f0] sm:$0xf]
        %v561 = vld [vmem:[#allocation5 + $0x1f4] sm:$0xf]
        %v562 = vld [vmem:[#allocation5 + $0x1f8] sm:$0xf]
        %v563 = vld [vmem:[#allocation5 + $0x1fc] sm:$0xf]
        %v692 = vunpack.c.l.b16 %v308
        %v693 = vunpack.c.h.b16 %v308
        %v694 = vunpack.c.l.b16 %v309
        %v695 = vunpack.c.h.b16 %v309
        %v696 = vunpack.c.l.b16 %v310
        %v697 = vunpack.c.h.b16 %v310
        %v698 = vunpack.c.l.b16 %v311
        %v699 = vunpack.c.h.b16 %v311
        %v700 = vunpack.c.l.b16 %v312
        %v701 = vunpack.c.h.b16 %v312
        %v702 = vunpack.c.l.b16 %v313
        %v703 = vunpack.c.h.b16 %v313
        %v704 = vunpack.c.l.b16 %v314
        %v705 = vunpack.c.h.b16 %v314
        %v706 = vunpack.c.l.b16 %v315
        %v707 = vunpack.c.h.b16 %v315
        %v708 = vunpack.c.l.b16 %v316
        %v709 = vunpack.c.h.b16 %v316
        %v710 = vunpack.c.l.b16 %v317
        %v711 = vunpack.c.h.b16 %v317
        %v712 = vunpack.c.l.b16 %v318
        %v713 = vunpack.c.h.b16 %v318
        %v714 = vunpack.c.l.b16 %v319
        %v715 = vunpack.c.h.b16 %v319
        %v716 = vunpack.c.l.b16 %v320
        %v717 = vunpack.c.h.b16 %v320
        %v718 = vunpack.c.l.b16 %v321
        %v719 = vunpack.c.h.b16 %v321
        %v720 = vunpack.c.l.b16 %v322
        %v721 = vunpack.c.h.b16 %v322
        %v722 = vunpack.c.l.b16 %v323
        %v723 = vunpack.c.h.b16 %v323
        %v724 = vunpack.c.l.b16 %v324
        %v725 = vunpack.c.h.b16 %v324
        %v726 = vunpack.c.l.b16 %v325
        %v727 = vunpack.c.h.b16 %v325
        %v728 = vunpack.c.l.b16 %v326
        %v729 = vunpack.c.h.b16 %v326
        %v730 = vunpack.c.l.b16 %v327
        %v731 = vunpack.c.h.b16 %v327
        %v732 = vunpack.c.l.b16 %v328
        %v733 = vunpack.c.h.b16 %v328
        %v734 = vunpack.c.l.b16 %v329
        %v735 = vunpack.c.h.b16 %v329
        %v736 = vunpack.c.l.b16 %v330
        %v737 = vunpack.c.h.b16 %v330
        %v738 = vunpack.c.l.b16 %v331
        %v739 = vunpack.c.h.b16 %v331
        %v740 = vunpack.c.l.b16 %v332
        %v741 = vunpack.c.h.b16 %v332
        %v742 = vunpack.c.l.b16 %v333
        %v743 = vunpack.c.h.b16 %v333
        %v744 = vunpack.c.l.b16 %v334
        %v745 = vunpack.c.h.b16 %v334
        %v746 = vunpack.c.l.b16 %v335
        %v747 = vunpack.c.h.b16 %v335
        %v748 = vunpack.c.l.b16 %v336
        %v749 = vunpack.c.h.b16 %v336
        %v750 = vunpack.c.l.b16 %v337
        %v751 = vunpack.c.h.b16 %v337
        %v752 = vunpack.c.l.b16 %v338
        %v753 = vunpack.c.h.b16 %v338
        %v754 = vunpack.c.l.b16 %v339
        %v755 = vunpack.c.h.b16 %v339
        %v756 = vunpack.c.l.b16 %v340
        %v757 = vunpack.c.h.b16 %v340
        %v758 = vunpack.c.l.b16 %v341
        %v759 = vunpack.c.h.b16 %v341
        %v760 = vunpack.c.l.b16 %v342
        %v761 = vunpack.c.h.b16 %v342
        %v762 = vunpack.c.l.b16 %v343
        %v763 = vunpack.c.h.b16 %v343
        %v764 = vunpack.c.l.b16 %v344
        %v765 = vunpack.c.h.b16 %v344
        %v766 = vunpack.c.l.b16 %v345
        %v767 = vunpack.c.h.b16 %v345
        %v768 = vunpack.c.l.b16 %v346
        %v769 = vunpack.c.h.b16 %v346
        %v770 = vunpack.c.l.b16 %v347
        %v771 = vunpack.c.h.b16 %v347
        %v772 = vunpack.c.l.b16 %v348
        %v773 = vunpack.c.h.b16 %v348
        %v774 = vunpack.c.l.b16 %v349
        %v775 = vunpack.c.h.b16 %v349
        %v776 = vunpack.c.l.b16 %v350
        %v777 = vunpack.c.h.b16 %v350
        %v778 = vunpack.c.l.b16 %v351
        %v779 = vunpack.c.h.b16 %v351
        %v780 = vunpack.c.l.b16 %v352
        %v781 = vunpack.c.h.b16 %v352
        %v782 = vunpack.c.l.b16 %v353
        %v783 = vunpack.c.h.b16 %v353
        %v784 = vunpack.c.l.b16 %v354
        %v785 = vunpack.c.h.b16 %v354
        %v786 = vunpack.c.l.b16 %v355
        %v787 = vunpack.c.h.b16 %v355
        %v788 = vunpack.c.l.b16 %v356
        %v789 = vunpack.c.h.b16 %v356
        %v790 = vunpack.c.l.b16 %v357
        %v791 = vunpack.c.h.b16 %v357
        %v792 = vunpack.c.l.b16 %v358
        %v793 = vunpack.c.h.b16 %v358
        %v794 = vunpack.c.l.b16 %v359
        %v795 = vunpack.c.h.b16 %v359
        %v796 = vunpack.c.l.b16 %v360
        %v797 = vunpack.c.h.b16 %v360
        %v798 = vunpack.c.l.b16 %v361
        %v799 = vunpack.c.h.b16 %v361
        %v800 = vunpack.c.l.b16 %v362
        %v801 = vunpack.c.h.b16 %v362
        %v802 = vunpack.c.l.b16 %v363
        %v803 = vunpack.c.h.b16 %v363
        %v804 = vunpack.c.l.b16 %v364
        %v805 = vunpack.c.h.b16 %v364
        %v806 = vunpack.c.l.b16 %v365
        %v807 = vunpack.c.h.b16 %v365
        %v808 = vunpack.c.l.b16 %v366
        %v809 = vunpack.c.h.b16 %v366
        %v810 = vunpack.c.l.b16 %v367
        %v811 = vunpack.c.h.b16 %v367
        %v812 = vunpack.c.l.b16 %v368
        %v813 = vunpack.c.h.b16 %v368
        %v814 = vunpack.c.l.b16 %v369
        %v815 = vunpack.c.h.b16 %v369
        %v816 = vunpack.c.l.b16 %v370
        %v817 = vunpack.c.h.b16 %v370
        %v818 = vunpack.c.l.b16 %v371
        %v819 = vunpack.c.h.b16 %v371
        %v820 = vunpack.c.l.b16 %v372
        %v821 = vunpack.c.h.b16 %v372
        %v822 = vunpack.c.l.b16 %v373
        %v823 = vunpack.c.h.b16 %v373
        %v824 = vunpack.c.l.b16 %v374
        %v825 = vunpack.c.h.b16 %v374
        %v826 = vunpack.c.l.b16 %v375
        %v827 = vunpack.c.h.b16 %v375
        %v828 = vunpack.c.l.b16 %v376
        %v829 = vunpack.c.h.b16 %v376
        %v830 = vunpack.c.l.b16 %v377
        %v831 = vunpack.c.h.b16 %v377
        %v832 = vunpack.c.l.b16 %v378
        %v833 = vunpack.c.h.b16 %v378
        %v834 = vunpack.c.l.b16 %v379
        %v835 = vunpack.c.h.b16 %v379
        %v836 = vunpack.c.l.b16 %v380
        %v837 = vunpack.c.h.b16 %v380
        %v838 = vunpack.c.l.b16 %v381
        %v839 = vunpack.c.h.b16 %v381
        %v840 = vunpack.c.l.b16 %v382
        %v841 = vunpack.c.h.b16 %v382
        %v842 = vunpack.c.l.b16 %v383
        %v843 = vunpack.c.h.b16 %v383
        %v844 = vunpack.c.l.b16 %v384
        %v845 = vunpack.c.h.b16 %v384
        %v846 = vunpack.c.l.b16 %v385
        %v847 = vunpack.c.h.b16 %v385
        %v848 = vunpack.c.l.b16 %v386
        %v849 = vunpack.c.h.b16 %v386
        %v850 = vunpack.c.l.b16 %v387
        %v851 = vunpack.c.h.b16 %v387
        %v852 = vunpack.c.l.b16 %v388
        %v853 = vunpack.c.h.b16 %v388
        %v854 = vunpack.c.l.b16 %v389
        %v855 = vunpack.c.h.b16 %v389
        %v856 = vunpack.c.l.b16 %v390
        %v857 = vunpack.c.h.b16 %v390
        %v858 = vunpack.c.l.b16 %v391
        %v859 = vunpack.c.h.b16 %v391
        %v860 = vunpack.c.l.b16 %v392
        %v861 = vunpack.c.h.b16 %v392
        %v862 = vunpack.c.l.b16 %v393
        %v863 = vunpack.c.h.b16 %v393
        %v864 = vunpack.c.l.b16 %v394
        %v865 = vunpack.c.h.b16 %v394
        %v866 = vunpack.c.l.b16 %v395
        %v867 = vunpack.c.h.b16 %v395
        %v868 = vunpack.c.l.b16 %v396
        %v869 = vunpack.c.h.b16 %v396
        %v870 = vunpack.c.l.b16 %v397
        %v871 = vunpack.c.h.b16 %v397
        %v872 = vunpack.c.l.b16 %v398
        %v873 = vunpack.c.h.b16 %v398
        %v874 = vunpack.c.l.b16 %v399
        %v875 = vunpack.c.h.b16 %v399
        %v876 = vunpack.c.l.b16 %v400
        %v877 = vunpack.c.h.b16 %v400
        %v878 = vunpack.c.l.b16 %v401
        %v879 = vunpack.c.h.b16 %v401
        %v880 = vunpack.c.l.b16 %v402
        %v881 = vunpack.c.h.b16 %v402
        %v882 = vunpack.c.l.b16 %v403
        %v883 = vunpack.c.h.b16 %v403
        %v884 = vunpack.c.l.b16 %v404
        %v885 = vunpack.c.h.b16 %v404
        %v886 = vunpack.c.l.b16 %v405
        %v887 = vunpack.c.h.b16 %v405
        %v888 = vunpack.c.l.b16 %v406
        %v889 = vunpack.c.h.b16 %v406
        %v890 = vunpack.c.l.b16 %v407
        %v891 = vunpack.c.h.b16 %v407
        %v892 = vunpack.c.l.b16 %v408
        %v893 = vunpack.c.h.b16 %v408
        %v894 = vunpack.c.l.b16 %v409
        %v895 = vunpack.c.h.b16 %v409
        %v896 = vunpack.c.l.b16 %v410
        %v897 = vunpack.c.h.b16 %v410
        %v898 = vunpack.c.l.b16 %v411
        %v899 = vunpack.c.h.b16 %v411
        %v900 = vunpack.c.l.b16 %v412
        %v901 = vunpack.c.h.b16 %v412
        %v902 = vunpack.c.l.b16 %v413
        %v903 = vunpack.c.h.b16 %v413
        %v904 = vunpack.c.l.b16 %v414
        %v905 = vunpack.c.h.b16 %v414
        %v906 = vunpack.c.l.b16 %v415
        %v907 = vunpack.c.h.b16 %v415
        %v908 = vunpack.c.l.b16 %v416
        %v909 = vunpack.c.h.b16 %v416
        %v910 = vunpack.c.l.b16 %v417
        %v911 = vunpack.c.h.b16 %v417
        %v912 = vunpack.c.l.b16 %v418
        %v913 = vunpack.c.h.b16 %v418
        %v914 = vunpack.c.l.b16 %v419
        %v915 = vunpack.c.h.b16 %v419
        %v916 = vunpack.c.l.b16 %v420
        %v917 = vunpack.c.h.b16 %v420
        %v918 = vunpack.c.l.b16 %v421
        %v919 = vunpack.c.h.b16 %v421
        %v920 = vunpack.c.l.b16 %v422
        %v921 = vunpack.c.h.b16 %v422
        %v922 = vunpack.c.l.b16 %v423
        %v923 = vunpack.c.h.b16 %v423
        %v924 = vunpack.c.l.b16 %v424
        %v925 = vunpack.c.h.b16 %v424
        %v926 = vunpack.c.l.b16 %v425
        %v927 = vunpack.c.h.b16 %v425
        %v928 = vunpack.c.l.b16 %v426
        %v929 = vunpack.c.h.b16 %v426
        %v930 = vunpack.c.l.b16 %v427
        %v931 = vunpack.c.h.b16 %v427
        %v932 = vunpack.c.l.b16 %v428
        %v933 = vunpack.c.h.b16 %v428
        %v934 = vunpack.c.l.b16 %v429
        %v935 = vunpack.c.h.b16 %v429
        %v936 = vunpack.c.l.b16 %v430
        %v937 = vunpack.c.h.b16 %v430
        %v938 = vunpack.c.l.b16 %v431
        %v939 = vunpack.c.h.b16 %v431
        %v940 = vunpack.c.l.b16 %v432
        %v941 = vunpack.c.h.b16 %v432
        %v942 = vunpack.c.l.b16 %v433
        %v943 = vunpack.c.h.b16 %v433
        %v944 = vunpack.c.l.b16 %v434
        %v945 = vunpack.c.h.b16 %v434
        %v946 = vunpack.c.l.b16 %v435
        %v947 = vunpack.c.h.b16 %v435
        %v948 = vpack.c.b16 %v700, %v692
        %v949 = vpack.c.b16 %v701, %v693
        %v950 = vpack.c.b16 %v702, %v694
        %v951 = vpack.c.b16 %v703, %v695
        %v952 = vpack.c.b16 %v704, %v696
        %v953 = vpack.c.b16 %v705, %v697
        %v954 = vpack.c.b16 %v706, %v698
        %v955 = vpack.c.b16 %v707, %v699
        %v956 = vpack.c.b16 %v716, %v708
        %v957 = vpack.c.b16 %v717, %v709
        %v958 = vpack.c.b16 %v718, %v710
        %v959 = vpack.c.b16 %v719, %v711
        %v960 = vpack.c.b16 %v720, %v712
        %v961 = vpack.c.b16 %v721, %v713
        %v962 = vpack.c.b16 %v722, %v714
        %v963 = vpack.c.b16 %v723, %v715
        %v964 = vpack.c.b16 %v732, %v724
        %v965 = vpack.c.b16 %v733, %v725
        %v966 = vpack.c.b16 %v734, %v726
        %v967 = vpack.c.b16 %v735, %v727
        %v968 = vpack.c.b16 %v736, %v728
        %v969 = vpack.c.b16 %v737, %v729
        %v970 = vpack.c.b16 %v738, %v730
        %v971 = vpack.c.b16 %v739, %v731
        %v972 = vpack.c.b16 %v748, %v740
        %v973 = vpack.c.b16 %v749, %v741
        %v974 = vpack.c.b16 %v750, %v742
        %v975 = vpack.c.b16 %v751, %v743
        %v976 = vpack.c.b16 %v752, %v744
        %v977 = vpack.c.b16 %v753, %v745
        %v978 = vpack.c.b16 %v754, %v746
        %v979 = vpack.c.b16 %v755, %v747
        %v980 = vpack.c.b16 %v764, %v756
        %v981 = vpack.c.b16 %v765, %v757
        %v982 = vpack.c.b16 %v766, %v758
        %v983 = vpack.c.b16 %v767, %v759
        %v984 = vpack.c.b16 %v768, %v760
        %v985 = vpack.c.b16 %v769, %v761
        %v986 = vpack.c.b16 %v770, %v762
        %v987 = vpack.c.b16 %v771, %v763
        %v988 = vpack.c.b16 %v780, %v772
        %v989 = vpack.c.b16 %v781, %v773
        %v990 = vpack.c.b16 %v782, %v774
        %v991 = vpack.c.b16 %v783, %v775
        %v992 = vpack.c.b16 %v784, %v776
        %v993 = vpack.c.b16 %v785, %v777
        %v994 = vpack.c.b16 %v786, %v778
        %v995 = vpack.c.b16 %v787, %v779
        %v996 = vpack.c.b16 %v796, %v788
        %v997 = vpack.c.b16 %v797, %v789
        %v998 = vpack.c.b16 %v798, %v790
        %v999 = vpack.c.b16 %v799, %v791
        %v1000 = vpack.c.b16 %v800, %v792
        %v1001 = vpack.c.b16 %v801, %v793
        %v1002 = vpack.c.b16 %v802, %v794
        %v1003 = vpack.c.b16 %v803, %v795
        %v1004 = vpack.c.b16 %v812, %v804
        %v1005 = vpack.c.b16 %v813, %v805
        %v1006 = vpack.c.b16 %v814, %v806
        %v1007 = vpack.c.b16 %v815, %v807
        %v1008 = vpack.c.b16 %v816, %v808
        %v1009 = vpack.c.b16 %v817, %v809
        %v1010 = vpack.c.b16 %v818, %v810
        %v1011 = vpack.c.b16 %v819, %v811
        %v1012 = vpack.c.b16 %v828, %v820
        %v1013 = vpack.c.b16 %v829, %v821
        %v1014 = vpack.c.b16 %v830, %v822
        %v1015 = vpack.c.b16 %v831, %v823
        %v1016 = vpack.c.b16 %v832, %v824
        %v1017 = vpack.c.b16 %v833, %v825
        %v1018 = vpack.c.b16 %v834, %v826
        %v1019 = vpack.c.b16 %v835, %v827
        %v1020 = vpack.c.b16 %v844, %v836
        %v1021 = vpack.c.b16 %v845, %v837
        %v1022 = vpack.c.b16 %v846, %v838
        %v1023 = vpack.c.b16 %v847, %v839
        %v1024 = vpack.c.b16 %v848, %v840
        %v1025 = vpack.c.b16 %v849, %v841
        %v1026 = vpack.c.b16 %v850, %v842
        %v1027 = vpack.c.b16 %v851, %v843
        %v1028 = vpack.c.b16 %v860, %v852
        %v1029 = vpack.c.b16 %v861, %v853
        %v1030 = vpack.c.b16 %v862, %v854
        %v1031 = vpack.c.b16 %v863, %v855
        %v1032 = vpack.c.b16 %v864, %v856
        %v1033 = vpack.c.b16 %v865, %v857
        %v1034 = vpack.c.b16 %v866, %v858
        %v1035 = vpack.c.b16 %v867, %v859
        %v1036 = vpack.c.b16 %v876, %v868
        %v1037 = vpack.c.b16 %v877, %v869
        %v1038 = vpack.c.b16 %v878, %v870
        %v1039 = vpack.c.b16 %v879, %v871
        %v1040 = vpack.c.b16 %v880, %v872
        %v1041 = vpack.c.b16 %v881, %v873
        %v1042 = vpack.c.b16 %v882, %v874
        %v1043 = vpack.c.b16 %v883, %v875
        %v1044 = vpack.c.b16 %v892, %v884
        %v1045 = vpack.c.b16 %v893, %v885
        %v1046 = vpack.c.b16 %v894, %v886
        %v1047 = vpack.c.b16 %v895, %v887
        %v1048 = vpack.c.b16 %v896, %v888
        %v1049 = vpack.c.b16 %v897, %v889
        %v1050 = vpack.c.b16 %v898, %v890
        %v1051 = vpack.c.b16 %v899, %v891
        %v1052 = vpack.c.b16 %v908, %v900
        %v1053 = vpack.c.b16 %v909, %v901
        %v1054 = vpack.c.b16 %v910, %v902
        %v1055 = vpack.c.b16 %v911, %v903
        %v1056 = vpack.c.b16 %v912, %v904
        %v1057 = vpack.c.b16 %v913, %v905
        %v1058 = vpack.c.b16 %v914, %v906
        %v1059 = vpack.c.b16 %v915, %v907
        %v1060 = vpack.c.b16 %v924, %v916
        %v1061 = vpack.c.b16 %v925, %v917
        %v1062 = vpack.c.b16 %v926, %v918
        %v1063 = vpack.c.b16 %v927, %v919
        %v1064 = vpack.c.b16 %v928, %v920
        %v1065 = vpack.c.b16 %v929, %v921
        %v1066 = vpack.c.b16 %v930, %v922
        %v1067 = vpack.c.b16 %v931, %v923
        %v1068 = vpack.c.b16 %v940, %v932
        %v1069 = vpack.c.b16 %v941, %v933
        %v1070 = vpack.c.b16 %v942, %v934
        %v1071 = vpack.c.b16 %v943, %v935
        %v1072 = vpack.c.b16 %v944, %v936
        %v1073 = vpack.c.b16 %v945, %v937
        %v1074 = vpack.c.b16 %v946, %v938
        %v1075 = vpack.c.b16 %v947, %v939
        %v1332 = vunpack.c.l.b16 %v436
        %v1333 = vunpack.c.l.b16 %v437
        %v1334 = vunpack.c.l.b16 %v438
        %v1335 = vunpack.c.l.b16 %v439
        %v1336 = vunpack.c.l.b16 %v440
        %v1337 = vunpack.c.l.b16 %v441
        %v1338 = vunpack.c.l.b16 %v442
        %v1339 = vunpack.c.l.b16 %v443
        %v1340 = vunpack.c.l.b16 %v444
        %v1341 = vunpack.c.l.b16 %v445
        %v1342 = vunpack.c.l.b16 %v446
        %v1343 = vunpack.c.l.b16 %v447
        %v1344 = vunpack.c.l.b16 %v448
        %v1345 = vunpack.c.l.b16 %v449
        %v1346 = vunpack.c.l.b16 %v450
        %v1347 = vunpack.c.l.b16 %v451
        %v1348 = vunpack.c.l.b16 %v452
        %v1349 = vunpack.c.l.b16 %v453
        %v1350 = vunpack.c.l.b16 %v454
        %v1351 = vunpack.c.l.b16 %v455
        %v1352 = vunpack.c.l.b16 %v456
        %v1353 = vunpack.c.l.b16 %v457
        %v1354 = vunpack.c.l.b16 %v458
        %v1355 = vunpack.c.l.b16 %v459
        %v1356 = vunpack.c.l.b16 %v460
        %v1357 = vunpack.c.l.b16 %v461
        %v1358 = vunpack.c.l.b16 %v462
        %v1359 = vunpack.c.l.b16 %v463
        %v1360 = vunpack.c.l.b16 %v464
        %v1361 = vunpack.c.l.b16 %v465
        %v1362 = vunpack.c.l.b16 %v466
        %v1363 = vunpack.c.l.b16 %v467
        %v1364 = vunpack.c.l.b16 %v468
        %v1365 = vunpack.c.l.b16 %v469
        %v1366 = vunpack.c.l.b16 %v470
        %v1367 = vunpack.c.l.b16 %v471
        %v1368 = vunpack.c.l.b16 %v472
        %v1369 = vunpack.c.l.b16 %v473
        %v1370 = vunpack.c.l.b16 %v474
        %v1371 = vunpack.c.l.b16 %v475
        %v1372 = vunpack.c.l.b16 %v476
        %v1373 = vunpack.c.l.b16 %v477
        %v1374 = vunpack.c.l.b16 %v478
        %v1375 = vunpack.c.l.b16 %v479
        %v1376 = vunpack.c.l.b16 %v480
        %v1377 = vunpack.c.l.b16 %v481
        %v1378 = vunpack.c.l.b16 %v482
        %v1379 = vunpack.c.l.b16 %v483
        %v1380 = vunpack.c.l.b16 %v484
        %v1381 = vunpack.c.l.b16 %v485
        %v1382 = vunpack.c.l.b16 %v486
        %v1383 = vunpack.c.l.b16 %v487
        %v1384 = vunpack.c.l.b16 %v488
        %v1385 = vunpack.c.l.b16 %v489
        %v1386 = vunpack.c.l.b16 %v490
        %v1387 = vunpack.c.l.b16 %v491
        %v1388 = vunpack.c.l.b16 %v492
        %v1389 = vunpack.c.l.b16 %v493
        %v1390 = vunpack.c.l.b16 %v494
        %v1391 = vunpack.c.l.b16 %v495
        %v1392 = vunpack.c.l.b16 %v496
        %v1393 = vunpack.c.l.b16 %v497
        %v1394 = vunpack.c.l.b16 %v498
        %v1395 = vunpack.c.l.b16 %v499
        %v1396 = vunpack.c.l.b16 %v500
        %v1397 = vunpack.c.l.b16 %v501
        %v1398 = vunpack.c.l.b16 %v502
        %v1399 = vunpack.c.l.b16 %v503
        %v1400 = vunpack.c.l.b16 %v504
        %v1401 = vunpack.c.l.b16 %v505
        %v1402 = vunpack.c.l.b16 %v506
        %v1403 = vunpack.c.l.b16 %v507
        %v1404 = vunpack.c.l.b16 %v508
        %v1405 = vunpack.c.l.b16 %v509
        %v1406 = vunpack.c.l.b16 %v510
        %v1407 = vunpack.c.l.b16 %v511
        %v1408 = vunpack.c.l.b16 %v512
        %v1409 = vunpack.c.l.b16 %v513
        %v1410 = vunpack.c.l.b16 %v514
        %v1411 = vunpack.c.l.b16 %v515
        %v1412 = vunpack.c.l.b16 %v516
        %v1413 = vunpack.c.l.b16 %v517
        %v1414 = vunpack.c.l.b16 %v518
        %v1415 = vunpack.c.l.b16 %v519
        %v1416 = vunpack.c.l.b16 %v520
        %v1417 = vunpack.c.l.b16 %v521
        %v1418 = vunpack.c.l.b16 %v522
        %v1419 = vunpack.c.l.b16 %v523
        %v1420 = vunpack.c.l.b16 %v524
        %v1421 = vunpack.c.l.b16 %v525
        %v1422 = vunpack.c.l.b16 %v526
        %v1423 = vunpack.c.l.b16 %v527
        %v1424 = vunpack.c.l.b16 %v528
        %v1425 = vunpack.c.l.b16 %v529
        %v1426 = vunpack.c.l.b16 %v530
        %v1427 = vunpack.c.l.b16 %v531
        %v1428 = vunpack.c.l.b16 %v532
        %v1429 = vunpack.c.l.b16 %v533
        %v1430 = vunpack.c.l.b16 %v534
        %v1431 = vunpack.c.l.b16 %v535
        %v1432 = vunpack.c.l.b16 %v536
        %v1433 = vunpack.c.l.b16 %v537
        %v1434 = vunpack.c.l.b16 %v538
        %v1435 = vunpack.c.l.b16 %v539
        %v1436 = vunpack.c.l.b16 %v540
        %v1437 = vunpack.c.l.b16 %v541
        %v1438 = vunpack.c.l.b16 %v542
        %v1439 = vunpack.c.l.b16 %v543
        %v1440 = vunpack.c.l.b16 %v544
        %v1441 = vunpack.c.l.b16 %v545
        %v1442 = vunpack.c.l.b16 %v546
        %v1443 = vunpack.c.l.b16 %v547
        %v1444 = vunpack.c.l.b16 %v548
        %v1445 = vunpack.c.l.b16 %v549
        %v1446 = vunpack.c.l.b16 %v550
        %v1447 = vunpack.c.l.b16 %v551
        %v1448 = vunpack.c.l.b16 %v552
        %v1449 = vunpack.c.l.b16 %v553
        %v1450 = vunpack.c.l.b16 %v554
        %v1451 = vunpack.c.l.b16 %v555
        %v1452 = vunpack.c.l.b16 %v556
        %v1453 = vunpack.c.l.b16 %v557
        %v1454 = vunpack.c.l.b16 %v558
        %v1455 = vunpack.c.l.b16 %v559
        %v1456 = vunpack.c.l.b16 %v560
        %v1457 = vunpack.c.l.b16 %v561
        %v1458 = vunpack.c.l.b16 %v562
        %v1459 = vunpack.c.l.b16 %v563
        %v1460 = vpack.c.b16 %v1333, %v1332
        %v1461 = vpack.c.b16 %v1335, %v1334
        %v1462 = vpack.c.b16 %v1337, %v1336
        %v1463 = vpack.c.b16 %v1339, %v1338
        %v1464 = vpack.c.b16 %v1341, %v1340
        %v1465 = vpack.c.b16 %v1343, %v1342
        %v1466 = vpack.c.b16 %v1345, %v1344
        %v1467 = vpack.c.b16 %v1347, %v1346
        %v1468 = vpack.c.b16 %v1349, %v1348
        %v1469 = vpack.c.b16 %v1351, %v1350
        %v1470 = vpack.c.b16 %v1353, %v1352
        %v1471 = vpack.c.b16 %v1355, %v1354
        %v1472 = vpack.c.b16 %v1357, %v1356
        %v1473 = vpack.c.b16 %v1359, %v1358
        %v1474 = vpack.c.b16 %v1361, %v1360
        %v1475 = vpack.c.b16 %v1363, %v1362
        %v1476 = vpack.c.b16 %v1365, %v1364
        %v1477 = vpack.c.b16 %v1367, %v1366
        %v1478 = vpack.c.b16 %v1369, %v1368
        %v1479 = vpack.c.b16 %v1371, %v1370
        %v1480 = vpack.c.b16 %v1373, %v1372
        %v1481 = vpack.c.b16 %v1375, %v1374
        %v1482 = vpack.c.b16 %v1377, %v1376
        %v1483 = vpack.c.b16 %v1379, %v1378
        %v1484 = vpack.c.b16 %v1381, %v1380
        %v1485 = vpack.c.b16 %v1383, %v1382
        %v1486 = vpack.c.b16 %v1385, %v1384
        %v1487 = vpack.c.b16 %v1387, %v1386
        %v1488 = vpack.c.b16 %v1389, %v1388
        %v1489 = vpack.c.b16 %v1391, %v1390
        %v1490 = vpack.c.b16 %v1393, %v1392
        %v1491 = vpack.c.b16 %v1395, %v1394
        %v1492 = vpack.c.b16 %v1397, %v1396
        %v1493 = vpack.c.b16 %v1399, %v1398
        %v1494 = vpack.c.b16 %v1401, %v1400
        %v1495 = vpack.c.b16 %v1403, %v1402
        %v1496 = vpack.c.b16 %v1405, %v1404
        %v1497 = vpack.c.b16 %v1407, %v1406
        %v1498 = vpack.c.b16 %v1409, %v1408
        %v1499 = vpack.c.b16 %v1411, %v1410
        %v1500 = vpack.c.b16 %v1413, %v1412
        %v1501 = vpack.c.b16 %v1415, %v1414
        %v1502 = vpack.c.b16 %v1417, %v1416
        %v1503 = vpack.c.b16 %v1419, %v1418
        %v1504 = vpack.c.b16 %v1421, %v1420
        %v1505 = vpack.c.b16 %v1423, %v1422
        %v1506 = vpack.c.b16 %v1425, %v1424
        %v1507 = vpack.c.b16 %v1427, %v1426
        %v1508 = vpack.c.b16 %v1429, %v1428
        %v1509 = vpack.c.b16 %v1431, %v1430
        %v1510 = vpack.c.b16 %v1433, %v1432
        %v1511 = vpack.c.b16 %v1435, %v1434
        %v1512 = vpack.c.b16 %v1437, %v1436
        %v1513 = vpack.c.b16 %v1439, %v1438
        %v1514 = vpack.c.b16 %v1441, %v1440
        %v1515 = vpack.c.b16 %v1443, %v1442
        %v1516 = vpack.c.b16 %v1445, %v1444
        %v1517 = vpack.c.b16 %v1447, %v1446
        %v1518 = vpack.c.b16 %v1449, %v1448
        %v1519 = vpack.c.b16 %v1451, %v1450
        %v1520 = vpack.c.b16 %v1453, %v1452
        %v1521 = vpack.c.b16 %v1455, %v1454
        %v1522 = vpack.c.b16 %v1457, %v1456
        %v1523 = vpack.c.b16 %v1459, %v1458
        %1588 = vmatprep.subr.bf16.mxu0 0
        %1589 = vmatpush1.bf16.msra.mxu0 %v1467
        %1590 = vmatprep.subr.bf16.mxu0 0
        %1591 = vmatpush1.bf16.msra.mxu0 %v1466
        %1592 = vmatprep.subr.bf16.mxu0 0
        %1593 = vmatpush1.bf16.msra.mxu0 %v1465
        %1594 = vmatprep.subr.bf16.mxu0 0
        %1595 = vmatpush1.bf16.msra.mxu0 %v1464
        %1596 = vmatprep.subr.bf16.mxu0 0
        %1597 = vmatpush1.bf16.msra.mxu0 %v1463
        %1598 = vmatprep.subr.bf16.mxu0 0
        %1599 = vmatpush1.bf16.msra.mxu0 %v1462
        %1600 = vmatprep.subr.bf16.mxu0 0
        %1601 = vmatpush1.bf16.msra.mxu0 %v1461
        %1602 = vmatprep.subr.bf16.mxu0 0
        %1603 = vmatpush1.bf16.msra.mxu0 %v1460
        %1604 = vmatprep.subr.bf16.mxu0 0
        %1605 = vmatpush2.bf16.msra.mxu0 %v1475
        %1606 = vmatprep.subr.bf16.mxu0 0
        %1607 = vmatpush2.bf16.msra.mxu0 %v1474
        %1608 = vmatprep.subr.bf16.mxu0 0
        %1609 = vmatpush2.bf16.msra.mxu0 %v1473
        %1610 = vmatprep.subr.bf16.mxu0 0
        %1611 = vmatpush2.bf16.msra.mxu0 %v1472
        %1612 = vmatprep.subr.bf16.mxu0 0
        %1613 = vmatpush2.bf16.msra.mxu0 %v1471
        %1614 = vmatprep.subr.bf16.mxu0 0
        %1615 = vmatpush2.bf16.msra.mxu0 %v1470
        %1616 = vmatprep.subr.bf16.mxu0 0
        %1617 = vmatpush2.bf16.msra.mxu0 %v1469
        %1618 = vmatprep.subr.bf16.mxu0 0
        %1619 = vmatpush2.bf16.msra.mxu0 %v1468
        %1620 = vmatprep.mubr.bf16.mxu0 %v949
        %1621 = vmatmul.mubr.bf16.gmra.mxu0 %v948
        %v1622 = vpop.f32.mrf.mxu0
        %v1623 = vadd.f32 0.0, %v1622
        %v1624 = vpop.f32.mrf.mxu0
        %v1625 = vpop.f32.mrf.mxu0
        %v1626 = vadd.f32 0.0, %v1625
        %v1627 = vpop.f32.mrf.mxu0
        %1628 = vmatprep.mubr.bf16.mxu0 %v957
        %1629 = vmatmul.mubr.bf16.gmra.mxu0 %v956
        %v1630 = vpop.f32.mrf.mxu0
        %v1631 = vadd.f32 0.0, %v1630
        %v1632 = vpop.f32.mrf.mxu0
        %v1633 = vpop.f32.mrf.mxu0
        %v1634 = vadd.f32 0.0, %v1633
        %v1635 = vpop.f32.mrf.mxu0
        %1636 = vmatprep.mubr.bf16.mxu0 %v965
        %1637 = vmatmul.mubr.bf16.gmra.mxu0 %v964
        %v1638 = vpop.f32.mrf.mxu0
        %v1639 = vadd.f32 0.0, %v1638
        %v1640 = vpop.f32.mrf.mxu0
        %v1641 = vpop.f32.mrf.mxu0
        %v1642 = vadd.f32 0.0, %v1641
        %v1643 = vpop.f32.mrf.mxu0
        %1644 = vmatprep.mubr.bf16.mxu0 %v973
        %1645 = vmatmul.mubr.bf16.gmra.mxu0 %v972
        %v1646 = vpop.f32.mrf.mxu0
        %v1647 = vadd.f32 0.0, %v1646
        %v1648 = vpop.f32.mrf.mxu0
        %v1649 = vpop.f32.mrf.mxu0
        %v1650 = vadd.f32 0.0, %v1649
        %v1651 = vpop.f32.mrf.mxu0
        %1652 = vmatprep.mubr.bf16.mxu0 %v981
        %1653 = vmatmul.mubr.bf16.gmra.mxu0 %v980
        %v1654 = vpop.f32.mrf.mxu0
        %v1655 = vadd.f32 0.0, %v1654
        %v1656 = vpop.f32.mrf.mxu0
        %v1657 = vpop.f32.mrf.mxu0
        %v1658 = vadd.f32 0.0, %v1657
        %v1659 = vpop.f32.mrf.mxu0
        %1660 = vmatprep.mubr.bf16.mxu0 %v989
        %1661 = vmatmul.mubr.bf16.gmra.mxu0 %v988
        %v1662 = vpop.f32.mrf.mxu0
        %v1663 = vadd.f32 0.0, %v1662
        %v1664 = vpop.f32.mrf.mxu0
        %v1665 = vpop.f32.mrf.mxu0
        %v1666 = vadd.f32 0.0, %v1665
        %v1667 = vpop.f32.mrf.mxu0
        %1668 = vmatprep.mubr.bf16.mxu0 %v997
        %1669 = vmatmul.mubr.bf16.gmra.mxu0 %v996
        %v1670 = vpop.f32.mrf.mxu0
        %v1671 = vadd.f32 0.0, %v1670
        %v1672 = vpop.f32.mrf.mxu0
        %v1673 = vpop.f32.mrf.mxu0
        %v1674 = vadd.f32 0.0, %v1673
        %v1675 = vpop.f32.mrf.mxu0
        %1676 = vmatprep.mubr.bf16.mxu0 %v1005
        %1677 = vmatmul.mubr.bf16.gmra.mxu0 %v1004
        %v1678 = vpop.f32.mrf.mxu0
        %v1679 = vadd.f32 0.0, %v1678
        %v1680 = vpop.f32.mrf.mxu0
        %v1681 = vpop.f32.mrf.mxu0
        %v1682 = vadd.f32 0.0, %v1681
        %v1683 = vpop.f32.mrf.mxu0
        %1684 = vmatprep.mubr.bf16.mxu0 %v1013
        %1685 = vmatmul.mubr.bf16.gmra.mxu0 %v1012
        %v1686 = vpop.f32.mrf.mxu0
        %v1687 = vadd.f32 0.0, %v1686
        %v1688 = vpop.f32.mrf.mxu0
        %v1689 = vpop.f32.mrf.mxu0
        %v1690 = vadd.f32 0.0, %v1689
        %v1691 = vpop.f32.mrf.mxu0
        %1692 = vmatprep.mubr.bf16.mxu0 %v1021
        %1693 = vmatmul.mubr.bf16.gmra.mxu0 %v1020
        %v1694 = vpop.f32.mrf.mxu0
        %v1695 = vadd.f32 0.0, %v1694
        %v1696 = vpop.f32.mrf.mxu0
        %v1697 = vpop.f32.mrf.mxu0
        %v1698 = vadd.f32 0.0, %v1697
        %v1699 = vpop.f32.mrf.mxu0
        %1700 = vmatprep.mubr.bf16.mxu0 %v1029
        %1701 = vmatmul.mubr.bf16.gmra.mxu0 %v1028
        %v1702 = vpop.f32.mrf.mxu0
        %v1703 = vadd.f32 0.0, %v1702
        %v1704 = vpop.f32.mrf.mxu0
        %v1705 = vpop.f32.mrf.mxu0
        %v1706 = vadd.f32 0.0, %v1705
        %v1707 = vpop.f32.mrf.mxu0
        %1708 = vmatprep.mubr.bf16.mxu0 %v1037
        %1709 = vmatmul.mubr.bf16.gmra.mxu0 %v1036
        %v1710 = vpop.f32.mrf.mxu0
        %v1711 = vadd.f32 0.0, %v1710
        %v1712 = vpop.f32.mrf.mxu0
        %v1713 = vpop.f32.mrf.mxu0
        %v1714 = vadd.f32 0.0, %v1713
        %v1715 = vpop.f32.mrf.mxu0
        %1716 = vmatprep.mubr.bf16.mxu0 %v1045
        %1717 = vmatmul.mubr.bf16.gmra.mxu0 %v1044
        %v1718 = vpop.f32.mrf.mxu0
        %v1719 = vadd.f32 0.0, %v1718
        %v1720 = vpop.f32.mrf.mxu0
        %v1721 = vpop.f32.mrf.mxu0
        %v1722 = vadd.f32 0.0, %v1721
        %v1723 = vpop.f32.mrf.mxu0
        %1724 = vmatprep.mubr.bf16.mxu0 %v1053
        %1725 = vmatmul.mubr.bf16.gmra.mxu0 %v1052
        %v1726 = vpop.f32.mrf.mxu0
        %v1727 = vadd.f32 0.0, %v1726
        %v1728 = vpop.f32.mrf.mxu0
        %v1729 = vpop.f32.mrf.mxu0
        %v1730 = vadd.f32 0.0, %v1729
        %v1731 = vpop.f32.mrf.mxu0
        %1732 = vmatprep.mubr.bf16.mxu0 %v1061
        %1733 = vmatmul.mubr.bf16.gmra.mxu0 %v1060
        %v1734 = vpop.f32.mrf.mxu0
        %v1735 = vadd.f32 0.0, %v1734
        %v1736 = vpop.f32.mrf.mxu0
        %v1737 = vpop.f32.mrf.mxu0
        %v1738 = vadd.f32 0.0, %v1737
        %v1739 = vpop.f32.mrf.mxu0
        %1740 = vmatprep.mubr.bf16.mxu0 %v1069
        %1741 = vmatmul.mubr.bf16.gmra.mxu0 %v1068
        %v1742 = vpop.f32.mrf.mxu0
        %v1743 = vadd.f32 0.0, %v1742
        %v1744 = vpop.f32.mrf.mxu0
        %v1745 = vpop.f32.mrf.mxu0
        %v1746 = vadd.f32 0.0, %v1745
        %v1747 = vpop.f32.mrf.mxu0
        %1748 = vdwg.mxu0
        %1749 = vmatprep.subr.bf16.mxu0 0
        %1750 = vmatpush1.bf16.msra.mxu0 %v1483
        %1751 = vmatprep.subr.bf16.mxu0 0
        %1752 = vmatpush1.bf16.msra.mxu0 %v1482
        %1753 = vmatprep.subr.bf16.mxu0 0
        %1754 = vmatpush1.bf16.msra.mxu0 %v1481
        %1755 = vmatprep.subr.bf16.mxu0 0
        %1756 = vmatpush1.bf16.msra.mxu0 %v1480
        %1757 = vmatprep.subr.bf16.mxu0 0
        %1758 = vmatpush1.bf16.msra.mxu0 %v1479
        %1759 = vmatprep.subr.bf16.mxu0 0
        %1760 = vmatpush1.bf16.msra.mxu0 %v1478
        %1761 = vmatprep.subr.bf16.mxu0 0
        %1762 = vmatpush1.bf16.msra.mxu0 %v1477
        %1763 = vmatprep.subr.bf16.mxu0 0
        %1764 = vmatpush1.bf16.msra.mxu0 %v1476
        %1765 = vmatprep.subr.bf16.mxu0 0
        %1766 = vmatpush2.bf16.msra.mxu0 %v1491
        %1767 = vmatprep.subr.bf16.mxu0 0
        %1768 = vmatpush2.bf16.msra.mxu0 %v1490
        %1769 = vmatprep.subr.bf16.mxu0 0
        %1770 = vmatpush2.bf16.msra.mxu0 %v1489
        %1771 = vmatprep.subr.bf16.mxu0 0
        %1772 = vmatpush2.bf16.msra.mxu0 %v1488
        %1773 = vmatprep.subr.bf16.mxu0 0
        %1774 = vmatpush2.bf16.msra.mxu0 %v1487
        %1775 = vmatprep.subr.bf16.mxu0 0
        %1776 = vmatpush2.bf16.msra.mxu0 %v1486
        %1777 = vmatprep.subr.bf16.mxu0 0
        %1778 = vmatpush2.bf16.msra.mxu0 %v1485
        %1779 = vmatprep.subr.bf16.mxu0 0
        %1780 = vmatpush2.bf16.msra.mxu0 %v1484
        %1781 = vmatprep.mubr.bf16.mxu0 %v951
        %1782 = vmatmul.mubr.bf16.gmra.mxu0 %v950
        %v1783 = vpop.f32.mrf.mxu0
        %v1784 = vadd.f32 %v1623, %v1783
        %v1785 = vpop.f32.mrf.mxu0
        %v1786 = vpop.f32.mrf.mxu0
        %v1787 = vadd.f32 %v1626, %v1786
        %v1788 = vpop.f32.mrf.mxu0
        %1789 = vmatprep.mubr.bf16.mxu0 %v959
        %1790 = vmatmul.mubr.bf16.gmra.mxu0 %v958
        %v1791 = vpop.f32.mrf.mxu0
        %v1792 = vadd.f32 %v1631, %v1791
        %v1793 = vpop.f32.mrf.mxu0
        %v1794 = vpop.f32.mrf.mxu0
        %v1795 = vadd.f32 %v1634, %v1794
        %v1796 = vpop.f32.mrf.mxu0
        %1797 = vmatprep.mubr.bf16.mxu0 %v967
        %1798 = vmatmul.mubr.bf16.gmra.mxu0 %v966
        %v1799 = vpop.f32.mrf.mxu0
        %v1800 = vadd.f32 %v1639, %v1799
        %v1801 = vpop.f32.mrf.mxu0
        %v1802 = vpop.f32.mrf.mxu0
        %v1803 = vadd.f32 %v1642, %v1802
        %v1804 = vpop.f32.mrf.mxu0
        %1805 = vmatprep.mubr.bf16.mxu0 %v975
        %1806 = vmatmul.mubr.bf16.gmra.mxu0 %v974
        %v1807 = vpop.f32.mrf.mxu0
        %v1808 = vadd.f32 %v1647, %v1807
        %v1809 = vpop.f32.mrf.mxu0
        %v1810 = vpop.f32.mrf.mxu0
        %v1811 = vadd.f32 %v1650, %v1810
        %v1812 = vpop.f32.mrf.mxu0
        %1813 = vmatprep.mubr.bf16.mxu0 %v983
        %1814 = vmatmul.mubr.bf16.gmra.mxu0 %v982
        %v1815 = vpop.f32.mrf.mxu0
        %v1816 = vadd.f32 %v1655, %v1815
        %v1817 = vpop.f32.mrf.mxu0
        %v1818 = vpop.f32.mrf.mxu0
        %v1819 = vadd.f32 %v1658, %v1818
        %v1820 = vpop.f32.mrf.mxu0
        %1821 = vmatprep.mubr.bf16.mxu0 %v991
        %1822 = vmatmul.mubr.bf16.gmra.mxu0 %v990
        %v1823 = vpop.f32.mrf.mxu0
        %v1824 = vadd.f32 %v1663, %v1823
        %v1825 = vpop.f32.mrf.mxu0
        %v1826 = vpop.f32.mrf.mxu0
        %v1827 = vadd.f32 %v1666, %v1826
        %v1828 = vpop.f32.mrf.mxu0
        %1829 = vmatprep.mubr.bf16.mxu0 %v999
        %1830 = vmatmul.mubr.bf16.gmra.mxu0 %v998
        %v1831 = vpop.f32.mrf.mxu0
        %v1832 = vadd.f32 %v1671, %v1831
        %v1833 = vpop.f32.mrf.mxu0
        %v1834 = vpop.f32.mrf.mxu0
        %v1835 = vadd.f32 %v1674, %v1834
        %v1836 = vpop.f32.mrf.mxu0
        %1837 = vmatprep.mubr.bf16.mxu0 %v1007
        %1838 = vmatmul.mubr.bf16.gmra.mxu0 %v1006
        %v1839 = vpop.f32.mrf.mxu0
        %v1840 = vadd.f32 %v1679, %v1839
        %v1841 = vpop.f32.mrf.mxu0
        %v1842 = vpop.f32.mrf.mxu0
        %v1843 = vadd.f32 %v1682, %v1842
        %v1844 = vpop.f32.mrf.mxu0
        %1845 = vmatprep.mubr.bf16.mxu0 %v1015
        %1846 = vmatmul.mubr.bf16.gmra.mxu0 %v1014
        %v1847 = vpop.f32.mrf.mxu0
        %v1848 = vadd.f32 %v1687, %v1847
        %v1849 = vpop.f32.mrf.mxu0
        %v1850 = vpop.f32.mrf.mxu0
        %v1851 = vadd.f32 %v1690, %v1850
        %v1852 = vpop.f32.mrf.mxu0
        %1853 = vmatprep.mubr.bf16.mxu0 %v1023
        %1854 = vmatmul.mubr.bf16.gmra.mxu0 %v1022
        %v1855 = vpop.f32.mrf.mxu0
        %v1856 = vadd.f32 %v1695, %v1855
        %v1857 = vpop.f32.mrf.mxu0
        %v1858 = vpop.f32.mrf.mxu0
        %v1859 = vadd.f32 %v1698, %v1858
        %v1860 = vpop.f32.mrf.mxu0
        %1861 = vmatprep.mubr.bf16.mxu0 %v1031
        %1862 = vmatmul.mubr.bf16.gmra.mxu0 %v1030
        %v1863 = vpop.f32.mrf.mxu0
        %v1864 = vadd.f32 %v1703, %v1863
        %v1865 = vpop.f32.mrf.mxu0
        %v1866 = vpop.f32.mrf.mxu0
        %v1867 = vadd.f32 %v1706, %v1866
        %v1868 = vpop.f32.mrf.mxu0
        %1869 = vmatprep.mubr.bf16.mxu0 %v1039
        %1870 = vmatmul.mubr.bf16.gmra.mxu0 %v1038
        %v1871 = vpop.f32.mrf.mxu0
        %v1872 = vadd.f32 %v1711, %v1871
        %v1873 = vpop.f32.mrf.mxu0
        %v1874 = vpop.f32.mrf.mxu0
        %v1875 = vadd.f32 %v1714, %v1874
        %v1876 = vpop.f32.mrf.mxu0
        %1877 = vmatprep.mubr.bf16.mxu0 %v1047
        %1878 = vmatmul.mubr.bf16.gmra.mxu0 %v1046
        %v1879 = vpop.f32.mrf.mxu0
        %v1880 = vadd.f32 %v1719, %v1879
        %v1881 = vpop.f32.mrf.mxu0
        %v1882 = vpop.f32.mrf.mxu0
        %v1883 = vadd.f32 %v1722, %v1882
        %v1884 = vpop.f32.mrf.mxu0
        %1885 = vmatprep.mubr.bf16.mxu0 %v1055
        %1886 = vmatmul.mubr.bf16.gmra.mxu0 %v1054
        %v1887 = vpop.f32.mrf.mxu0
        %v1888 = vadd.f32 %v1727, %v1887
        %v1889 = vpop.f32.mrf.mxu0
        %v1890 = vpop.f32.mrf.mxu0
        %v1891 = vadd.f32 %v1730, %v1890
        %v1892 = vpop.f32.mrf.mxu0
        %1893 = vmatprep.mubr.bf16.mxu0 %v1063
        %1894 = vmatmul.mubr.bf16.gmra.mxu0 %v1062
        %v1895 = vpop.f32.mrf.mxu0
        %v1896 = vadd.f32 %v1735, %v1895
        %v1897 = vpop.f32.mrf.mxu0
        %v1898 = vpop.f32.mrf.mxu0
        %v1899 = vadd.f32 %v1738, %v1898
        %v1900 = vpop.f32.mrf.mxu0
        %1901 = vmatprep.mubr.bf16.mxu0 %v1071
        %1902 = vmatmul.mubr.bf16.gmra.mxu0 %v1070
        %v1903 = vpop.f32.mrf.mxu0
        %v1904 = vadd.f32 %v1743, %v1903
        %v1905 = vpop.f32.mrf.mxu0
        %v1906 = vpop.f32.mrf.mxu0
        %v1907 = vadd.f32 %v1746, %v1906
        %v1908 = vpop.f32.mrf.mxu0
        %1909 = vdwg.mxu0
        %1910 = vmatprep.subr.bf16.mxu0 0
        %1911 = vmatpush1.bf16.msra.mxu0 %v1499
        %1912 = vmatprep.subr.bf16.mxu0 0
        %1913 = vmatpush1.bf16.msra.mxu0 %v1498
        %1914 = vmatprep.subr.bf16.mxu0 0
        %1915 = vmatpush1.bf16.msra.mxu0 %v1497
        %1916 = vmatprep.subr.bf16.mxu0 0
        %1917 = vmatpush1.bf16.msra.mxu0 %v1496
        %1918 = vmatprep.subr.bf16.mxu0 0
        %1919 = vmatpush1.bf16.msra.mxu0 %v1495
        %1920 = vmatprep.subr.bf16.mxu0 0
        %1921 = vmatpush1.bf16.msra.mxu0 %v1494
        %1922 = vmatprep.subr.bf16.mxu0 0
        %1923 = vmatpush1.bf16.msra.mxu0 %v1493
        %1924 = vmatprep.subr.bf16.mxu0 0
        %1925 = vmatpush1.bf16.msra.mxu0 %v1492
        %1926 = vmatprep.subr.bf16.mxu0 0
        %1927 = vmatpush2.bf16.msra.mxu0 %v1507
        %1928 = vmatprep.subr.bf16.mxu0 0
        %1929 = vmatpush2.bf16.msra.mxu0 %v1506
        %1930 = vmatprep.subr.bf16.mxu0 0
        %1931 = vmatpush2.bf16.msra.mxu0 %v1505
        %1932 = vmatprep.subr.bf16.mxu0 0
        %1933 = vmatpush2.bf16.msra.mxu0 %v1504
        %1934 = vmatprep.subr.bf16.mxu0 0
        %1935 = vmatpush2.bf16.msra.mxu0 %v1503
        %1936 = vmatprep.subr.bf16.mxu0 0
        %1937 = vmatpush2.bf16.msra.mxu0 %v1502
        %1938 = vmatprep.subr.bf16.mxu0 0
        %1939 = vmatpush2.bf16.msra.mxu0 %v1501
        %1940 = vmatprep.subr.bf16.mxu0 0
        %1941 = vmatpush2.bf16.msra.mxu0 %v1500
        %1942 = vmatprep.mubr.bf16.mxu0 %v953
        %1943 = vmatmul.mubr.bf16.gmra.mxu0 %v952
        %v1944 = vpop.f32.mrf.mxu0
        %v1945 = vadd.f32 %v1784, %v1944
        %v1946 = vpop.f32.mrf.mxu0
        %v1947 = vpop.f32.mrf.mxu0
        %v1948 = vadd.f32 %v1787, %v1947
        %v1949 = vpop.f32.mrf.mxu0
        %1950 = vmatprep.mubr.bf16.mxu0 %v961
        %1951 = vmatmul.mubr.bf16.gmra.mxu0 %v960
        %v1952 = vpop.f32.mrf.mxu0
        %v1953 = vadd.f32 %v1792, %v1952
        %v1954 = vpop.f32.mrf.mxu0
        %v1955 = vpop.f32.mrf.mxu0
        %v1956 = vadd.f32 %v1795, %v1955
        %v1957 = vpop.f32.mrf.mxu0
        %1958 = vmatprep.mubr.bf16.mxu0 %v969
        %1959 = vmatmul.mubr.bf16.gmra.mxu0 %v968
        %v1960 = vpop.f32.mrf.mxu0
        %v1961 = vadd.f32 %v1800, %v1960
        %v1962 = vpop.f32.mrf.mxu0
        %v1963 = vpop.f32.mrf.mxu0
        %v1964 = vadd.f32 %v1803, %v1963
        %v1965 = vpop.f32.mrf.mxu0
        %1966 = vmatprep.mubr.bf16.mxu0 %v977
        %1967 = vmatmul.mubr.bf16.gmra.mxu0 %v976
        %v1968 = vpop.f32.mrf.mxu0
        %v1969 = vadd.f32 %v1808, %v1968
        %v1970 = vpop.f32.mrf.mxu0
        %v1971 = vpop.f32.mrf.mxu0
        %v1972 = vadd.f32 %v1811, %v1971
        %v1973 = vpop.f32.mrf.mxu0
        %1974 = vmatprep.mubr.bf16.mxu0 %v985
        %1975 = vmatmul.mubr.bf16.gmra.mxu0 %v984
        %v1976 = vpop.f32.mrf.mxu0
        %v1977 = vadd.f32 %v1816, %v1976
        %v1978 = vpop.f32.mrf.mxu0
        %v1979 = vpop.f32.mrf.mxu0
        %v1980 = vadd.f32 %v1819, %v1979
        %v1981 = vpop.f32.mrf.mxu0
        %1982 = vmatprep.mubr.bf16.mxu0 %v993
        %1983 = vmatmul.mubr.bf16.gmra.mxu0 %v992
        %v1984 = vpop.f32.mrf.mxu0
        %v1985 = vadd.f32 %v1824, %v1984
        %v1986 = vpop.f32.mrf.mxu0
        %v1987 = vpop.f32.mrf.mxu0
        %v1988 = vadd.f32 %v1827, %v1987
        %v1989 = vpop.f32.mrf.mxu0
        %1990 = vmatprep.mubr.bf16.mxu0 %v1001
        %1991 = vmatmul.mubr.bf16.gmra.mxu0 %v1000
        %v1992 = vpop.f32.mrf.mxu0
        %v1993 = vadd.f32 %v1832, %v1992
        %v1994 = vpop.f32.mrf.mxu0
        %v1995 = vpop.f32.mrf.mxu0
        %v1996 = vadd.f32 %v1835, %v1995
        %v1997 = vpop.f32.mrf.mxu0
        %1998 = vmatprep.mubr.bf16.mxu0 %v1009
        %1999 = vmatmul.mubr.bf16.gmra.mxu0 %v1008
        %v2000 = vpop.f32.mrf.mxu0
        %v2001 = vadd.f32 %v1840, %v2000
        %v2002 = vpop.f32.mrf.mxu0
        %v2003 = vpop.f32.mrf.mxu0
        %v2004 = vadd.f32 %v1843, %v2003
        %v2005 = vpop.f32.mrf.mxu0
        %2006 = vmatprep.mubr.bf16.mxu0 %v1017
        %2007 = vmatmul.mubr.bf16.gmra.mxu0 %v1016
        %v2008 = vpop.f32.mrf.mxu0
        %v2009 = vadd.f32 %v1848, %v2008
        %v2010 = vpop.f32.mrf.mxu0
        %v2011 = vpop.f32.mrf.mxu0
        %v2012 = vadd.f32 %v1851, %v2011
        %v2013 = vpop.f32.mrf.mxu0
        %2014 = vmatprep.mubr.bf16.mxu0 %v1025
        %2015 = vmatmul.mubr.bf16.gmra.mxu0 %v1024
        %v2016 = vpop.f32.mrf.mxu0
        %v2017 = vadd.f32 %v1856, %v2016
        %v2018 = vpop.f32.mrf.mxu0
        %v2019 = vpop.f32.mrf.mxu0
        %v2020 = vadd.f32 %v1859, %v2019
        %v2021 = vpop.f32.mrf.mxu0
        %2022 = vmatprep.mubr.bf16.mxu0 %v1033
        %2023 = vmatmul.mubr.bf16.gmra.mxu0 %v1032
        %v2024 = vpop.f32.mrf.mxu0
        %v2025 = vadd.f32 %v1864, %v2024
        %v2026 = vpop.f32.mrf.mxu0
        %v2027 = vpop.f32.mrf.mxu0
        %v2028 = vadd.f32 %v1867, %v2027
        %v2029 = vpop.f32.mrf.mxu0
        %2030 = vmatprep.mubr.bf16.mxu0 %v1041
        %2031 = vmatmul.mubr.bf16.gmra.mxu0 %v1040
        %v2032 = vpop.f32.mrf.mxu0
        %v2033 = vadd.f32 %v1872, %v2032
        %v2034 = vpop.f32.mrf.mxu0
        %v2035 = vpop.f32.mrf.mxu0
        %v2036 = vadd.f32 %v1875, %v2035
        %v2037 = vpop.f32.mrf.mxu0
        %2038 = vmatprep.mubr.bf16.mxu0 %v1049
        %2039 = vmatmul.mubr.bf16.gmra.mxu0 %v1048
        %v2040 = vpop.f32.mrf.mxu0
        %v2041 = vadd.f32 %v1880, %v2040
        %v2042 = vpop.f32.mrf.mxu0
        %v2043 = vpop.f32.mrf.mxu0
        %v2044 = vadd.f32 %v1883, %v2043
        %v2045 = vpop.f32.mrf.mxu0
        %2046 = vmatprep.mubr.bf16.mxu0 %v1057
        %2047 = vmatmul.mubr.bf16.gmra.mxu0 %v1056
        %v2048 = vpop.f32.mrf.mxu0
        %v2049 = vadd.f32 %v1888, %v2048
        %v2050 = vpop.f32.mrf.mxu0
        %v2051 = vpop.f32.mrf.mxu0
        %v2052 = vadd.f32 %v1891, %v2051
        %v2053 = vpop.f32.mrf.mxu0
        %2054 = vmatprep.mubr.bf16.mxu0 %v1065
        %2055 = vmatmul.mubr.bf16.gmra.mxu0 %v1064
        %v2056 = vpop.f32.mrf.mxu0
        %v2057 = vadd.f32 %v1896, %v2056
        %v2058 = vpop.f32.mrf.mxu0
        %v2059 = vpop.f32.mrf.mxu0
        %v2060 = vadd.f32 %v1899, %v2059
        %v2061 = vpop.f32.mrf.mxu0
        %2062 = vmatprep.mubr.bf16.mxu0 %v1073
        %2063 = vmatmul.mubr.bf16.gmra.mxu0 %v1072
        %v2064 = vpop.f32.mrf.mxu0
        %v2065 = vadd.f32 %v1904, %v2064
        %v2066 = vpop.f32.mrf.mxu0
        %v2067 = vpop.f32.mrf.mxu0
        %v2068 = vadd.f32 %v1907, %v2067
        %v2069 = vpop.f32.mrf.mxu0
        %2070 = vdwg.mxu0
        %2071 = vmatprep.subr.bf16.mxu0 0
        %2072 = vmatpush1.bf16.msra.mxu0 %v1515
        %2073 = vmatprep.subr.bf16.mxu0 0
        %2074 = vmatpush1.bf16.msra.mxu0 %v1514
        %2075 = vmatprep.subr.bf16.mxu0 0
        %2076 = vmatpush1.bf16.msra.mxu0 %v1513
        %2077 = vmatprep.subr.bf16.mxu0 0
        %2078 = vmatpush1.bf16.msra.mxu0 %v1512
        %2079 = vmatprep.subr.bf16.mxu0 0
        %2080 = vmatpush1.bf16.msra.mxu0 %v1511
        %2081 = vmatprep.subr.bf16.mxu0 0
        %2082 = vmatpush1.bf16.msra.mxu0 %v1510
        %2083 = vmatprep.subr.bf16.mxu0 0
        %2084 = vmatpush1.bf16.msra.mxu0 %v1509
        %2085 = vmatprep.subr.bf16.mxu0 0
        %2086 = vmatpush1.bf16.msra.mxu0 %v1508
        %2087 = vmatprep.subr.bf16.mxu0 0
        %2088 = vmatpush2.bf16.msra.mxu0 %v1523
        %2089 = vmatprep.subr.bf16.mxu0 0
        %2090 = vmatpush2.bf16.msra.mxu0 %v1522
        %2091 = vmatprep.subr.bf16.mxu0 0
        %2092 = vmatpush2.bf16.msra.mxu0 %v1521
        %2093 = vmatprep.subr.bf16.mxu0 0
        %2094 = vmatpush2.bf16.msra.mxu0 %v1520
        %2095 = vmatprep.subr.bf16.mxu0 0
        %2096 = vmatpush2.bf16.msra.mxu0 %v1519
        %2097 = vmatprep.subr.bf16.mxu0 0
        %2098 = vmatpush2.bf16.msra.mxu0 %v1518
        %2099 = vmatprep.subr.bf16.mxu0 0
        %2100 = vmatpush2.bf16.msra.mxu0 %v1517
        %2101 = vmatprep.subr.bf16.mxu0 0
        %2102 = vmatpush2.bf16.msra.mxu0 %v1516
        %2103 = vmatprep.mubr.bf16.mxu0 %v955
        %2104 = vmatmul.mubr.bf16.gmra.mxu0 %v954
        %v2105 = vpop.f32.mrf.mxu0
        %v2106 = vadd.f32 %v1945, %v2105
        %v2107 = vpop.f32.mrf.mxu0
        %v2108 = vpop.f32.mrf.mxu0
        %v2109 = vadd.f32 %v1948, %v2108
        %v2110 = vpop.f32.mrf.mxu0
        %2111 = vmatprep.mubr.bf16.mxu0 %v963
        %2112 = vmatmul.mubr.bf16.gmra.mxu0 %v962
        %v2113 = vpop.f32.mrf.mxu0
        %v2114 = vadd.f32 %v1953, %v2113
        %v2115 = vpop.f32.mrf.mxu0
        %v2116 = vpop.f32.mrf.mxu0
        %v2117 = vadd.f32 %v1956, %v2116
        %v2118 = vpop.f32.mrf.mxu0
        %2119 = vmatprep.mubr.bf16.mxu0 %v971
        %2120 = vmatmul.mubr.bf16.gmra.mxu0 %v970
        %v2121 = vpop.f32.mrf.mxu0
        %v2122 = vadd.f32 %v1961, %v2121
        %v2123 = vpop.f32.mrf.mxu0
        %v2124 = vpop.f32.mrf.mxu0
        %v2125 = vadd.f32 %v1964, %v2124
        %v2126 = vpop.f32.mrf.mxu0
        %2127 = vmatprep.mubr.bf16.mxu0 %v979
        %2128 = vmatmul.mubr.bf16.gmra.mxu0 %v978
        %v2129 = vpop.f32.mrf.mxu0
        %v2130 = vadd.f32 %v1969, %v2129
        %v2131 = vpop.f32.mrf.mxu0
        %v2132 = vpop.f32.mrf.mxu0
        %v2133 = vadd.f32 %v1972, %v2132
        %v2134 = vpop.f32.mrf.mxu0
        %2135 = vmatprep.mubr.bf16.mxu0 %v987
        %2136 = vmatmul.mubr.bf16.gmra.mxu0 %v986
        %v2137 = vpop.f32.mrf.mxu0
        %v2138 = vadd.f32 %v1977, %v2137
        %v2139 = vpop.f32.mrf.mxu0
        %v2140 = vpop.f32.mrf.mxu0
        %v2141 = vadd.f32 %v1980, %v2140
        %v2142 = vpop.f32.mrf.mxu0
        %2143 = vmatprep.mubr.bf16.mxu0 %v995
        %2144 = vmatmul.mubr.bf16.gmra.mxu0 %v994
        %v2145 = vpop.f32.mrf.mxu0
        %v2146 = vadd.f32 %v1985, %v2145
        %v2147 = vpop.f32.mrf.mxu0
        %v2148 = vpop.f32.mrf.mxu0
        %v2149 = vadd.f32 %v1988, %v2148
        %v2150 = vpop.f32.mrf.mxu0
        %2151 = vmatprep.mubr.bf16.mxu0 %v1003
        %2152 = vmatmul.mubr.bf16.gmra.mxu0 %v1002
        %v2153 = vpop.f32.mrf.mxu0
        %v2154 = vadd.f32 %v1993, %v2153
        %v2155 = vpop.f32.mrf.mxu0
        %v2156 = vpop.f32.mrf.mxu0
        %v2157 = vadd.f32 %v1996, %v2156
        %v2158 = vpop.f32.mrf.mxu0
        %2159 = vmatprep.mubr.bf16.mxu0 %v1011
        %2160 = vmatmul.mubr.bf16.gmra.mxu0 %v1010
        %v2161 = vpop.f32.mrf.mxu0
        %v2162 = vadd.f32 %v2001, %v2161
        %v2163 = vpop.f32.mrf.mxu0
        %v2164 = vpop.f32.mrf.mxu0
        %v2165 = vadd.f32 %v2004, %v2164
        %v2166 = vpop.f32.mrf.mxu0
        %2167 = vmatprep.mubr.bf16.mxu0 %v1019
        %2168 = vmatmul.mubr.bf16.gmra.mxu0 %v1018
        %v2169 = vpop.f32.mrf.mxu0
        %v2170 = vadd.f32 %v2009, %v2169
        %v2171 = vpop.f32.mrf.mxu0
        %v2172 = vpop.f32.mrf.mxu0
        %v2173 = vadd.f32 %v2012, %v2172
        %v2174 = vpop.f32.mrf.mxu0
        %2175 = vmatprep.mubr.bf16.mxu0 %v1027
        %2176 = vmatmul.mubr.bf16.gmra.mxu0 %v1026
        %v2177 = vpop.f32.mrf.mxu0
        %v2178 = vadd.f32 %v2017, %v2177
        %v2179 = vpop.f32.mrf.mxu0
        %v2180 = vpop.f32.mrf.mxu0
        %v2181 = vadd.f32 %v2020, %v2180
        %v2182 = vpop.f32.mrf.mxu0
        %2183 = vmatprep.mubr.bf16.mxu0 %v1035
        %2184 = vmatmul.mubr.bf16.gmra.mxu0 %v1034
        %v2185 = vpop.f32.mrf.mxu0
        %v2186 = vadd.f32 %v2025, %v2185
        %v2187 = vpop.f32.mrf.mxu0
        %v2188 = vpop.f32.mrf.mxu0
        %v2189 = vadd.f32 %v2028, %v2188
        %v2190 = vpop.f32.mrf.mxu0
        %2191 = vmatprep.mubr.bf16.mxu0 %v1043
        %2192 = vmatmul.mubr.bf16.gmra.mxu0 %v1042
        %v2193 = vpop.f32.mrf.mxu0
        %v2194 = vadd.f32 %v2033, %v2193
        %v2195 = vpop.f32.mrf.mxu0
        %v2196 = vpop.f32.mrf.mxu0
        %v2197 = vadd.f32 %v2036, %v2196
        %v2198 = vpop.f32.mrf.mxu0
        %2199 = vmatprep.mubr.bf16.mxu0 %v1051
        %2200 = vmatmul.mubr.bf16.gmra.mxu0 %v1050
        %v2201 = vpop.f32.mrf.mxu0
        %v2202 = vadd.f32 %v2041, %v2201
        %v2203 = vpop.f32.mrf.mxu0
        %v2204 = vpop.f32.mrf.mxu0
        %v2205 = vadd.f32 %v2044, %v2204
        %v2206 = vpop.f32.mrf.mxu0
        %2207 = vmatprep.mubr.bf16.mxu0 %v1059
        %2208 = vmatmul.mubr.bf16.gmra.mxu0 %v1058
        %v2209 = vpop.f32.mrf.mxu0
        %v2210 = vadd.f32 %v2049, %v2209
        %v2211 = vpop.f32.mrf.mxu0
        %v2212 = vpop.f32.mrf.mxu0
        %v2213 = vadd.f32 %v2052, %v2212
        %v2214 = vpop.f32.mrf.mxu0
        %2215 = vmatprep.mubr.bf16.mxu0 %v1067
        %2216 = vmatmul.mubr.bf16.gmra.mxu0 %v1066
        %v2217 = vpop.f32.mrf.mxu0
        %v2218 = vadd.f32 %v2057, %v2217
        %v2219 = vpop.f32.mrf.mxu0
        %v2220 = vpop.f32.mrf.mxu0
        %v2221 = vadd.f32 %v2060, %v2220
        %v2222 = vpop.f32.mrf.mxu0
        %2223 = vmatprep.mubr.bf16.mxu0 %v1075
        %2224 = vmatmul.mubr.bf16.gmra.mxu0 %v1074
        %v2225 = vpop.f32.mrf.mxu0
        %v2226 = vadd.f32 %v2065, %v2225
        %v2227 = vpop.f32.mrf.mxu0
        %v2228 = vpop.f32.mrf.mxu0
        %v2229 = vadd.f32 %v2068, %v2228
        %v2230 = vpop.f32.mrf.mxu0
        %2231 = vdwg.mxu0
        %v2232 = vmax.f32 %v2106, 0.0
        %v2233 = vmax.f32 %v2109, 0.0
        %v2234 = vmax.f32 %v2114, 0.0
        %v2235 = vmax.f32 %v2117, 0.0
        %v2236 = vmax.f32 %v2122, 0.0
        %v2237 = vmax.f32 %v2125, 0.0
        %v2238 = vmax.f32 %v2130, 0.0
        %v2239 = vmax.f32 %v2133, 0.0
        %v2240 = vmax.f32 %v2138, 0.0
        %v2241 = vmax.f32 %v2141, 0.0
        %v2242 = vmax.f32 %v2146, 0.0
        %v2243 = vmax.f32 %v2149, 0.0
        %v2244 = vmax.f32 %v2154, 0.0
        %v2245 = vmax.f32 %v2157, 0.0
        %v2246 = vmax.f32 %v2162, 0.0
        %v2247 = vmax.f32 %v2165, 0.0
        %v2248 = vmax.f32 %v2170, 0.0
        %v2249 = vmax.f32 %v2173, 0.0
        %v2250 = vmax.f32 %v2178, 0.0
        %v2251 = vmax.f32 %v2181, 0.0
        %v2252 = vmax.f32 %v2186, 0.0
        %v2253 = vmax.f32 %v2189, 0.0
        %v2254 = vmax.f32 %v2194, 0.0
        %v2255 = vmax.f32 %v2197, 0.0
        %v2256 = vmax.f32 %v2202, 0.0
        %v2257 = vmax.f32 %v2205, 0.0
        %v2258 = vmax.f32 %v2210, 0.0
        %v2259 = vmax.f32 %v2213, 0.0
        %v2260 = vmax.f32 %v2218, 0.0
        %v2261 = vmax.f32 %v2221, 0.0
        %v2262 = vmax.f32 %v2226, 0.0
        %v2263 = vmax.f32 %v2229, 0.0
        %v2264 = vpack.c.bf16 %v2233, %v2232
        %v2265 = vpack.c.bf16 %v2235, %v2234
        %v2266 = vpack.c.bf16 %v2237, %v2236
        %v2267 = vpack.c.bf16 %v2239, %v2238
        %v2268 = vpack.c.bf16 %v2241, %v2240
        %v2269 = vpack.c.bf16 %v2243, %v2242
        %v2270 = vpack.c.bf16 %v2245, %v2244
        %v2271 = vpack.c.bf16 %v2247, %v2246
        %v2272 = vpack.c.bf16 %v2249, %v2248
        %v2273 = vpack.c.bf16 %v2251, %v2250
        %v2274 = vpack.c.bf16 %v2253, %v2252
        %v2275 = vpack.c.bf16 %v2255, %v2254
        %v2276 = vpack.c.bf16 %v2257, %v2256
        %v2277 = vpack.c.bf16 %v2259, %v2258
        %v2278 = vpack.c.bf16 %v2261, %v2260
        %v2279 = vpack.c.bf16 %v2263, %v2262
        %v2280 = vld [vmem:[#allocation7] sm:$0xf]
        %v2281 = vld [vmem:[#allocation7 + $0x4] sm:$0xf]
        %v2282 = vld [vmem:[#allocation7 + $0x8] sm:$0xf]
        %v2283 = vld [vmem:[#allocation7 + $0xc] sm:$0xf]
        %v2284 = vld [vmem:[#allocation7 + $0x10] sm:$0xf]
        %v2285 = vld [vmem:[#allocation7 + $0x14] sm:$0xf]
        %v2286 = vld [vmem:[#allocation7 + $0x18] sm:$0xf]
        %v2287 = vld [vmem:[#allocation7 + $0x1c] sm:$0xf]
        %v2288 = vld [vmem:[#allocation7 + $0x20] sm:$0xf]
        %v2289 = vld [vmem:[#allocation7 + $0x24] sm:$0xf]
        %v2290 = vld [vmem:[#allocation7 + $0x28] sm:$0xf]
        %v2291 = vld [vmem:[#allocation7 + $0x2c] sm:$0xf]
        %v2292 = vld [vmem:[#allocation7 + $0x30] sm:$0xf]
        %v2293 = vld [vmem:[#allocation7 + $0x34] sm:$0xf]
        %v2294 = vld [vmem:[#allocation7 + $0x38] sm:$0xf]
        %v2295 = vld [vmem:[#allocation7 + $0x3c] sm:$0xf]
        %v2296 = vld [vmem:[%s3] sm:$0x1]
        %v2298 = vlaneseq
        %v2299 = vshrl.u32 %v2298, 7
        %v2300 = vsub.s32 0, %v2299
        %v2301 = vrot.slane %v2296, %v2300
        %v2319 = vunpack.c.l.b16 %v2280
        %v2320 = vunpack.c.l.b16 %v2281
        %v2321 = vunpack.c.l.b16 %v2282
        %v2322 = vunpack.c.l.b16 %v2283
        %v2323 = vunpack.c.l.b16 %v2284
        %v2324 = vunpack.c.l.b16 %v2285
        %v2325 = vunpack.c.l.b16 %v2286
        %v2326 = vunpack.c.l.b16 %v2287
        %v2327 = vunpack.c.l.b16 %v2288
        %v2328 = vunpack.c.l.b16 %v2289
        %v2329 = vunpack.c.l.b16 %v2290
        %v2330 = vunpack.c.l.b16 %v2291
        %v2331 = vunpack.c.l.b16 %v2292
        %v2332 = vunpack.c.l.b16 %v2293
        %v2333 = vunpack.c.l.b16 %v2294
        %v2334 = vunpack.c.l.b16 %v2295
        %v2335 = vpack.c.b16 %v2320, %v2319
        %v2336 = vpack.c.b16 %v2322, %v2321
        %v2337 = vpack.c.b16 %v2324, %v2323
        %v2338 = vpack.c.b16 %v2326, %v2325
        %v2339 = vpack.c.b16 %v2328, %v2327
        %v2340 = vpack.c.b16 %v2330, %v2329
        %v2341 = vpack.c.b16 %v2332, %v2331
        %v2342 = vpack.c.b16 %v2334, %v2333
        %2351 = vmatprep.subr.bf16.mxu0 0
        %2352 = vmatpush1.bf16.msra.mxu0 %v2342
        %2353 = vmatprep.subr.bf16.mxu0 0
        %2354 = vmatpush1.bf16.msra.mxu0 %v2341
        %2355 = vmatprep.subr.bf16.mxu0 0
        %2356 = vmatpush1.bf16.msra.mxu0 %v2340
        %2357 = vmatprep.subr.bf16.mxu0 0
        %2358 = vmatpush1.bf16.msra.mxu0 %v2339
        %2359 = vmatprep.subr.bf16.mxu0 0
        %2360 = vmatpush1.bf16.msra.mxu0 %v2338
        %2361 = vmatprep.subr.bf16.mxu0 0
        %2362 = vmatpush1.bf16.msra.mxu0 %v2337
        %2363 = vmatprep.subr.bf16.mxu0 0
        %2364 = vmatpush1.bf16.msra.mxu0 %v2336
        %2365 = vmatprep.subr.bf16.mxu0 0
        %2366 = vmatpush1.bf16.msra.mxu0 %v2335
        %2367 = vmatprep.subr.bf16.mxu0 0
        %2368 = vmatpush2.bf16.msra.mxu0 0
        %2369 = vmatprep.subr.bf16.mxu0 0
        %2370 = vmatpush2.bf16.msra.mxu0 0
        %2371 = vmatprep.subr.bf16.mxu0 0
        %2372 = vmatpush2.bf16.msra.mxu0 0
        %2373 = vmatprep.subr.bf16.mxu0 0
        %2374 = vmatpush2.bf16.msra.mxu0 0
        %2375 = vmatprep.subr.bf16.mxu0 0
        %2376 = vmatpush2.bf16.msra.mxu0 0
        %2377 = vmatprep.subr.bf16.mxu0 0
        %2378 = vmatpush2.bf16.msra.mxu0 0
        %2379 = vmatprep.subr.bf16.mxu0 0
        %2380 = vmatpush2.bf16.msra.mxu0 0
        %2381 = vmatprep.subr.bf16.mxu0 0
        %2382 = vmatpush2.bf16.msra.mxu0 0
        %2383 = vmatprep.mubr.bf16.mxu0 0
        %2384 = vmatmul.mubr.bf16.gmra.mxu0 %v2264
        %v2385 = vpop.f32.mrf.mxu0
        %v2386 = vadd.f32 %v2301, %v2385
        %v2387 = vpop.f32.mrf.mxu0
        %v2388 = vpop.f32.mrf.mxu0
        %v2389 = vadd.f32 %v2301, %v2388
        %v2390 = vpop.f32.mrf.mxu0
        %2391 = vmatprep.mubr.bf16.mxu0 0
        %2392 = vmatmul.mubr.bf16.gmra.mxu0 %v2265
        %v2393 = vpop.f32.mrf.mxu0
        %v2394 = vadd.f32 %v2301, %v2393
        %v2395 = vpop.f32.mrf.mxu0
        %v2396 = vpop.f32.mrf.mxu0
        %v2397 = vadd.f32 %v2301, %v2396
        %v2398 = vpop.f32.mrf.mxu0
        %2399 = vmatprep.mubr.bf16.mxu0 0
        %2400 = vmatmul.mubr.bf16.gmra.mxu0 %v2266
        %v2401 = vpop.f32.mrf.mxu0
        %v2402 = vadd.f32 %v2301, %v2401
        %v2403 = vpop.f32.mrf.mxu0
        %v2404 = vpop.f32.mrf.mxu0
        %v2405 = vadd.f32 %v2301, %v2404
        %v2406 = vpop.f32.mrf.mxu0
        %2407 = vmatprep.mubr.bf16.mxu0 0
        %2408 = vmatmul.mubr.bf16.gmra.mxu0 %v2267
        %v2409 = vpop.f32.mrf.mxu0
        %v2410 = vadd.f32 %v2301, %v2409
        %v2411 = vpop.f32.mrf.mxu0
        %v2412 = vpop.f32.mrf.mxu0
        %v2413 = vadd.f32 %v2301, %v2412
        %v2414 = vpop.f32.mrf.mxu0
        %2415 = vmatprep.mubr.bf16.mxu0 0
        %2416 = vmatmul.mubr.bf16.gmra.mxu0 %v2268
        %v2417 = vpop.f32.mrf.mxu0
        %v2418 = vadd.f32 %v2301, %v2417
        %v2419 = vpop.f32.mrf.mxu0
        %v2420 = vpop.f32.mrf.mxu0
        %v2421 = vadd.f32 %v2301, %v2420
        %v2422 = vpop.f32.mrf.mxu0
        %2423 = vmatprep.mubr.bf16.mxu0 0
        %2424 = vmatmul.mubr.bf16.gmra.mxu0 %v2269
        %v2425 = vpop.f32.mrf.mxu0
        %v2426 = vadd.f32 %v2301, %v2425
        %v2427 = vpop.f32.mrf.mxu0
        %v2428 = vpop.f32.mrf.mxu0
        %v2429 = vadd.f32 %v2301, %v2428
        %v2430 = vpop.f32.mrf.mxu0
        %2431 = vmatprep.mubr.bf16.mxu0 0
        %2432 = vmatmul.mubr.bf16.gmra.mxu0 %v2270
        %v2433 = vpop.f32.mrf.mxu0
        %v2434 = vadd.f32 %v2301, %v2433
        %v2435 = vpop.f32.mrf.mxu0
        %v2436 = vpop.f32.mrf.mxu0
        %v2437 = vadd.f32 %v2301, %v2436
        %v2438 = vpop.f32.mrf.mxu0
        %2439 = vmatprep.mubr.bf16.mxu0 0
        %2440 = vmatmul.mubr.bf16.gmra.mxu0 %v2271
        %v2441 = vpop.f32.mrf.mxu0
        %v2442 = vadd.f32 %v2301, %v2441
        %v2443 = vpop.f32.mrf.mxu0
        %v2444 = vpop.f32.mrf.mxu0
        %v2445 = vadd.f32 %v2301, %v2444
        %v2446 = vpop.f32.mrf.mxu0
        %2447 = vmatprep.mubr.bf16.mxu0 0
        %2448 = vmatmul.mubr.bf16.gmra.mxu0 %v2272
        %v2449 = vpop.f32.mrf.mxu0
        %v2450 = vadd.f32 %v2301, %v2449
        %v2451 = vpop.f32.mrf.mxu0
        %v2452 = vpop.f32.mrf.mxu0
        %v2453 = vadd.f32 %v2301, %v2452
        %v2454 = vpop.f32.mrf.mxu0
        %2455 = vmatprep.mubr.bf16.mxu0 0
        %2456 = vmatmul.mubr.bf16.gmra.mxu0 %v2273
        %v2457 = vpop.f32.mrf.mxu0
        %v2458 = vadd.f32 %v2301, %v2457
        %v2459 = vpop.f32.mrf.mxu0
        %v2460 = vpop.f32.mrf.mxu0
        %v2461 = vadd.f32 %v2301, %v2460
        %v2462 = vpop.f32.mrf.mxu0
        %2463 = vmatprep.mubr.bf16.mxu0 0
        %2464 = vmatmul.mubr.bf16.gmra.mxu0 %v2274
        %v2465 = vpop.f32.mrf.mxu0
        %v2466 = vadd.f32 %v2301, %v2465
        %v2467 = vpop.f32.mrf.mxu0
        %v2468 = vpop.f32.mrf.mxu0
        %v2469 = vadd.f32 %v2301, %v2468
        %v2470 = vpop.f32.mrf.mxu0
        %2471 = vmatprep.mubr.bf16.mxu0 0
        %2472 = vmatmul.mubr.bf16.gmra.mxu0 %v2275
        %v2473 = vpop.f32.mrf.mxu0
        %v2474 = vadd.f32 %v2301, %v2473
        %v2475 = vpop.f32.mrf.mxu0
        %v2476 = vpop.f32.mrf.mxu0
        %v2477 = vadd.f32 %v2301, %v2476
        %v2478 = vpop.f32.mrf.mxu0
        %2479 = vmatprep.mubr.bf16.mxu0 0
        %2480 = vmatmul.mubr.bf16.gmra.mxu0 %v2276
        %v2481 = vpop.f32.mrf.mxu0
        %v2482 = vadd.f32 %v2301, %v2481
        %v2483 = vpop.f32.mrf.mxu0
        %v2484 = vpop.f32.mrf.mxu0
        %v2485 = vadd.f32 %v2301, %v2484
        %v2486 = vpop.f32.mrf.mxu0
        %2487 = vmatprep.mubr.bf16.mxu0 0
        %2488 = vmatmul.mubr.bf16.gmra.mxu0 %v2277
        %v2489 = vpop.f32.mrf.mxu0
        %v2490 = vadd.f32 %v2301, %v2489
        %v2491 = vpop.f32.mrf.mxu0
        %v2492 = vpop.f32.mrf.mxu0
        %v2493 = vadd.f32 %v2301, %v2492
        %v2494 = vpop.f32.mrf.mxu0
        %2495 = vmatprep.mubr.bf16.mxu0 0
        %2496 = vmatmul.mubr.bf16.gmra.mxu0 %v2278
        %v2497 = vpop.f32.mrf.mxu0
        %v2498 = vadd.f32 %v2301, %v2497
        %v2499 = vpop.f32.mrf.mxu0
        %v2500 = vpop.f32.mrf.mxu0
        %v2501 = vadd.f32 %v2301, %v2500
        %v2502 = vpop.f32.mrf.mxu0
        %2503 = vmatprep.mubr.bf16.mxu0 0
        %2504 = vmatmul.mubr.bf16.gmra.mxu0 %v2279
        %v2505 = vpop.f32.mrf.mxu0
        %v2506 = vadd.f32 %v2301, %v2505
        %v2507 = vpop.f32.mrf.mxu0
        %v2508 = vpop.f32.mrf.mxu0
        %v2509 = vadd.f32 %v2301, %v2508
        %v2510 = vpop.f32.mrf.mxu0
        %2511 = vdwg.mxu0
        %v2512 = vmax.f32 %v2386, 0.0
        %v2513 = vmax.f32 %v2389, 0.0
        %v2514 = vmax.f32 %v2394, 0.0
        %v2515 = vmax.f32 %v2397, 0.0
        %v2516 = vmax.f32 %v2402, 0.0
        %v2517 = vmax.f32 %v2405, 0.0
        %v2518 = vmax.f32 %v2410, 0.0
        %v2519 = vmax.f32 %v2413, 0.0
        %v2520 = vmax.f32 %v2418, 0.0
        %v2521 = vmax.f32 %v2421, 0.0
        %v2522 = vmax.f32 %v2426, 0.0
        %v2523 = vmax.f32 %v2429, 0.0
        %v2524 = vmax.f32 %v2434, 0.0
        %v2525 = vmax.f32 %v2437, 0.0
        %v2526 = vmax.f32 %v2442, 0.0
        %v2527 = vmax.f32 %v2445, 0.0
        %v2528 = vmax.f32 %v2450, 0.0
        %v2529 = vmax.f32 %v2453, 0.0
        %v2530 = vmax.f32 %v2458, 0.0
        %v2531 = vmax.f32 %v2461, 0.0
        %v2532 = vmax.f32 %v2466, 0.0
        %v2533 = vmax.f32 %v2469, 0.0
        %v2534 = vmax.f32 %v2474, 0.0
        %v2535 = vmax.f32 %v2477, 0.0
        %v2536 = vmax.f32 %v2482, 0.0
        %v2537 = vmax.f32 %v2485, 0.0
        %v2538 = vmax.f32 %v2490, 0.0
        %v2539 = vmax.f32 %v2493, 0.0
        %v2540 = vmax.f32 %v2498, 0.0
        %v2541 = vmax.f32 %v2501, 0.0
        %v2542 = vmax.f32 %v2506, 0.0
        %v2543 = vmax.f32 %v2509, 0.0
        %v2560 = vunpack.c.l.b16 %v2264
        %v2561 = vunpack.c.h.b16 %v2264
        %v2562 = vunpack.c.l.b16 %v2265
        %v2563 = vunpack.c.h.b16 %v2265
        %v2564 = vunpack.c.l.b16 %v2266
        %v2565 = vunpack.c.h.b16 %v2266
        %v2566 = vunpack.c.l.b16 %v2267
        %v2567 = vunpack.c.h.b16 %v2267
        %v2568 = vunpack.c.l.b16 %v2268
        %v2569 = vunpack.c.h.b16 %v2268
        %v2570 = vunpack.c.l.b16 %v2269
        %v2571 = vunpack.c.h.b16 %v2269
        %v2572 = vunpack.c.l.b16 %v2270
        %v2573 = vunpack.c.h.b16 %v2270
        %v2574 = vunpack.c.l.b16 %v2271
        %v2575 = vunpack.c.h.b16 %v2271
        %v2576 = vunpack.c.l.b16 %v2272
        %v2577 = vunpack.c.h.b16 %v2272
        %v2578 = vunpack.c.l.b16 %v2273
        %v2579 = vunpack.c.h.b16 %v2273
        %v2580 = vunpack.c.l.b16 %v2274
        %v2581 = vunpack.c.h.b16 %v2274
        %v2582 = vunpack.c.l.b16 %v2275
        %v2583 = vunpack.c.h.b16 %v2275
        %v2584 = vunpack.c.l.b16 %v2276
        %v2585 = vunpack.c.h.b16 %v2276
        %v2586 = vunpack.c.l.b16 %v2277
        %v2587 = vunpack.c.h.b16 %v2277
        %v2588 = vunpack.c.l.b16 %v2278
        %v2589 = vunpack.c.h.b16 %v2278
        %v2590 = vunpack.c.l.b16 %v2279
        %v2591 = vunpack.c.h.b16 %v2279
        %v2592 = vpack.c.b16 %v2560, %v2560
        %v2593 = vpack.c.b16 %v2561, %v2561
        %v2594 = vpack.c.b16 %v2562, %v2562
        %v2595 = vpack.c.b16 %v2563, %v2563
        %v2596 = vpack.c.b16 %v2564, %v2564
        %v2597 = vpack.c.b16 %v2565, %v2565
        %v2598 = vpack.c.b16 %v2566, %v2566
        %v2599 = vpack.c.b16 %v2567, %v2567
        %v2600 = vpack.c.b16 %v2568, %v2568
        %v2601 = vpack.c.b16 %v2569, %v2569
        %v2602 = vpack.c.b16 %v2570, %v2570
        %v2603 = vpack.c.b16 %v2571, %v2571
        %v2604 = vpack.c.b16 %v2572, %v2572
        %v2605 = vpack.c.b16 %v2573, %v2573
        %v2606 = vpack.c.b16 %v2574, %v2574
        %v2607 = vpack.c.b16 %v2575, %v2575
        %v2608 = vpack.c.b16 %v2576, %v2576
        %v2609 = vpack.c.b16 %v2577, %v2577
        %v2610 = vpack.c.b16 %v2578, %v2578
        %v2611 = vpack.c.b16 %v2579, %v2579
        %v2612 = vpack.c.b16 %v2580, %v2580
        %v2613 = vpack.c.b16 %v2581, %v2581
        %v2614 = vpack.c.b16 %v2582, %v2582
        %v2615 = vpack.c.b16 %v2583, %v2583
        %v2616 = vpack.c.b16 %v2584, %v2584
        %v2617 = vpack.c.b16 %v2585, %v2585
        %v2618 = vpack.c.b16 %v2586, %v2586
        %v2619 = vpack.c.b16 %v2587, %v2587
        %v2620 = vpack.c.b16 %v2588, %v2588
        %v2621 = vpack.c.b16 %v2589, %v2589
        %v2622 = vpack.c.b16 %v2590, %v2590
        %v2623 = vpack.c.b16 %v2591, %v2591
        %2656 = vst [vmem:[%s296] sm:$0xf] %v2592
        %2657 = vst [vmem:[%s296 + $0x4] sm:$0xf] %v2593
        %2658 = vst [vmem:[%s296 + $0x8] sm:$0xf] %v2594
        %2659 = vst [vmem:[%s296 + $0xc] sm:$0xf] %v2595
        %2660 = vst [vmem:[%s296 + $0x10] sm:$0xf] %v2596
        %2661 = vst [vmem:[%s296 + $0x14] sm:$0xf] %v2597
        %2662 = vst [vmem:[%s296 + $0x18] sm:$0xf] %v2598
        %2663 = vst [vmem:[%s296 + $0x1c] sm:$0xf] %v2599
        %2664 = vst [vmem:[%s296 + $0x20] sm:$0xf] %v2600
        %2665 = vst [vmem:[%s296 + $0x24] sm:$0xf] %v2601
        %2666 = vst [vmem:[%s296 + $0x28] sm:$0xf] %v2602
        %2667 = vst [vmem:[%s296 + $0x2c] sm:$0xf] %v2603
        %2668 = vst [vmem:[%s296 + $0x30] sm:$0xf] %v2604
        %2669 = vst [vmem:[%s296 + $0x34] sm:$0xf] %v2605
        %2670 = vst [vmem:[%s296 + $0x38] sm:$0xf] %v2606
        %2671 = vst [vmem:[%s296 + $0x3c] sm:$0xf] %v2607
        %2672 = vst [vmem:[%s296 + $0x40] sm:$0xf] %v2608
        %2673 = vst [vmem:[%s296 + $0x44] sm:$0xf] %v2609
        %2674 = vst [vmem:[%s296 + $0x48] sm:$0xf] %v2610
        %2675 = vst [vmem:[%s296 + $0x4c] sm:$0xf] %v2611
        %2676 = vst [vmem:[%s296 + $0x50] sm:$0xf] %v2612
        %2677 = vst [vmem:[%s296 + $0x54] sm:$0xf] %v2613
        %2678 = vst [vmem:[%s296 + $0x58] sm:$0xf] %v2614
        %2679 = vst [vmem:[%s296 + $0x5c] sm:$0xf] %v2615
        %2680 = vst [vmem:[%s296 + $0x60] sm:$0xf] %v2616
        %2681 = vst [vmem:[%s296 + $0x64] sm:$0xf] %v2617
        %2682 = vst [vmem:[%s296 + $0x68] sm:$0xf] %v2618
        %2683 = vst [vmem:[%s296 + $0x6c] sm:$0xf] %v2619
        %2684 = vst [vmem:[%s296 + $0x70] sm:$0xf] %v2620
        %2685 = vst [vmem:[%s296 + $0x74] sm:$0xf] %v2621
        %2686 = vst [vmem:[%s296 + $0x78] sm:$0xf] %v2622
        %2687 = vst [vmem:[%s296 + $0x7c] sm:$0xf] %v2623
        %v2688 = vpack.c.bf16 %v2513, %v2512
        %v2689 = vpack.c.bf16 %v2515, %v2514
        %v2690 = vpack.c.bf16 %v2517, %v2516
        %v2691 = vpack.c.bf16 %v2519, %v2518
        %v2692 = vpack.c.bf16 %v2521, %v2520
        %v2693 = vpack.c.bf16 %v2523, %v2522
        %v2694 = vpack.c.bf16 %v2525, %v2524
        %v2695 = vpack.c.bf16 %v2527, %v2526
        %v2696 = vpack.c.bf16 %v2529, %v2528
        %v2697 = vpack.c.bf16 %v2531, %v2530
        %v2698 = vpack.c.bf16 %v2533, %v2532
        %v2699 = vpack.c.bf16 %v2535, %v2534
        %v2700 = vpack.c.bf16 %v2537, %v2536
        %v2701 = vpack.c.bf16 %v2539, %v2538
        %v2702 = vpack.c.bf16 %v2541, %v2540
        %v2703 = vpack.c.bf16 %v2543, %v2542
        %v2720 = vunpack.c.l.b16 %v2688
        %v2721 = vunpack.c.h.b16 %v2688
        %v2722 = vunpack.c.l.b16 %v2689
        %v2723 = vunpack.c.h.b16 %v2689
        %v2724 = vunpack.c.l.b16 %v2690
        %v2725 = vunpack.c.h.b16 %v2690
        %v2726 = vunpack.c.l.b16 %v2691
        %v2727 = vunpack.c.h.b16 %v2691
        %v2728 = vunpack.c.l.b16 %v2692
        %v2729 = vunpack.c.h.b16 %v2692
        %v2730 = vunpack.c.l.b16 %v2693
        %v2731 = vunpack.c.h.b16 %v2693
        %v2732 = vunpack.c.l.b16 %v2694
        %v2733 = vunpack.c.h.b16 %v2694
        %v2734 = vunpack.c.l.b16 %v2695
        %v2735 = vunpack.c.h.b16 %v2695
        %v2736 = vunpack.c.l.b16 %v2696
        %v2737 = vunpack.c.h.b16 %v2696
        %v2738 = vunpack.c.l.b16 %v2697
        %v2739 = vunpack.c.h.b16 %v2697
        %v2740 = vunpack.c.l.b16 %v2698
        %v2741 = vunpack.c.h.b16 %v2698
        %v2742 = vunpack.c.l.b16 %v2699
        %v2743 = vunpack.c.h.b16 %v2699
        %v2744 = vunpack.c.l.b16 %v2700
        %v2745 = vunpack.c.h.b16 %v2700
        %v2746 = vunpack.c.l.b16 %v2701
        %v2747 = vunpack.c.h.b16 %v2701
        %v2748 = vunpack.c.l.b16 %v2702
        %v2749 = vunpack.c.h.b16 %v2702
        %v2750 = vunpack.c.l.b16 %v2703
        %v2751 = vunpack.c.h.b16 %v2703
        %v2752 = vpack.c.b16 %v2720, %v2720
        %v2753 = vpack.c.b16 %v2721, %v2721
        %v2754 = vpack.c.b16 %v2722, %v2722
        %v2755 = vpack.c.b16 %v2723, %v2723
        %v2756 = vpack.c.b16 %v2724, %v2724
        %v2757 = vpack.c.b16 %v2725, %v2725
        %v2758 = vpack.c.b16 %v2726, %v2726
        %v2759 = vpack.c.b16 %v2727, %v2727
        %v2760 = vpack.c.b16 %v2728, %v2728
        %v2761 = vpack.c.b16 %v2729, %v2729
        %v2762 = vpack.c.b16 %v2730, %v2730
        %v2763 = vpack.c.b16 %v2731, %v2731
        %v2764 = vpack.c.b16 %v2732, %v2732
        %v2765 = vpack.c.b16 %v2733, %v2733
        %v2766 = vpack.c.b16 %v2734, %v2734
        %v2767 = vpack.c.b16 %v2735, %v2735
        %v2768 = vpack.c.b16 %v2736, %v2736
        %v2769 = vpack.c.b16 %v2737, %v2737
        %v2770 = vpack.c.b16 %v2738, %v2738
        %v2771 = vpack.c.b16 %v2739, %v2739
        %v2772 = vpack.c.b16 %v2740, %v2740
        %v2773 = vpack.c.b16 %v2741, %v2741
        %v2774 = vpack.c.b16 %v2742, %v2742
        %v2775 = vpack.c.b16 %v2743, %v2743
        %v2776 = vpack.c.b16 %v2744, %v2744
        %v2777 = vpack.c.b16 %v2745, %v2745
        %v2778 = vpack.c.b16 %v2746, %v2746
        %v2779 = vpack.c.b16 %v2747, %v2747
        %v2780 = vpack.c.b16 %v2748, %v2748
        %v2781 = vpack.c.b16 %v2749, %v2749
        %v2782 = vpack.c.b16 %v2750, %v2750
        %v2783 = vpack.c.b16 %v2751, %v2751
        %2816 = vst [vmem:[%s303] sm:$0xf] %v2752
        %2817 = vst [vmem:[%s303 + $0x4] sm:$0xf] %v2753
        %2818 = vst [vmem:[%s303 + $0x8] sm:$0xf] %v2754
        %2819 = vst [vmem:[%s303 + $0xc] sm:$0xf] %v2755
        %2820 = vst [vmem:[%s303 + $0x10] sm:$0xf] %v2756
        %2821 = vst [vmem:[%s303 + $0x14] sm:$0xf] %v2757
        %2822 = vst [vmem:[%s303 + $0x18] sm:$0xf] %v2758
        %2823 = vst [vmem:[%s303 + $0x1c] sm:$0xf] %v2759
        %2824 = vst [vmem:[%s303 + $0x20] sm:$0xf] %v2760
        %2825 = vst [vmem:[%s303 + $0x24] sm:$0xf] %v2761
        %2826 = vst [vmem:[%s303 + $0x28] sm:$0xf] %v2762
        %2827 = vst [vmem:[%s303 + $0x2c] sm:$0xf] %v2763
        %2828 = vst [vmem:[%s303 + $0x30] sm:$0xf] %v2764
        %2829 = vst [vmem:[%s303 + $0x34] sm:$0xf] %v2765
        %2830 = vst [vmem:[%s303 + $0x38] sm:$0xf] %v2766
        %2831 = vst [vmem:[%s303 + $0x3c] sm:$0xf] %v2767
        %2832 = vst [vmem:[%s303 + $0x40] sm:$0xf] %v2768
        %2833 = vst [vmem:[%s303 + $0x44] sm:$0xf] %v2769
        %2834 = vst [vmem:[%s303 + $0x48] sm:$0xf] %v2770
        %2835 = vst [vmem:[%s303 + $0x4c] sm:$0xf] %v2771
        %2836 = vst [vmem:[%s303 + $0x50] sm:$0xf] %v2772
        %2837 = vst [vmem:[%s303 + $0x54] sm:$0xf] %v2773
        %2838 = vst [vmem:[%s303 + $0x58] sm:$0xf] %v2774
        %2839 = vst [vmem:[%s303 + $0x5c] sm:$0xf] %v2775
        %2840 = vst [vmem:[%s303 + $0x60] sm:$0xf] %v2776
        %2841 = vst [vmem:[%s303 + $0x64] sm:$0xf] %v2777
        %2842 = vst [vmem:[%s303 + $0x68] sm:$0xf] %v2778
        %2843 = vst [vmem:[%s303 + $0x6c] sm:$0xf] %v2779
        %2844 = vst [vmem:[%s303 + $0x70] sm:$0xf] %v2780
        %2845 = vst [vmem:[%s303 + $0x74] sm:$0xf] %v2781
        %2846 = vst [vmem:[%s303 + $0x78] sm:$0xf] %v2782
        %2847 = vst [vmem:[%s303 + $0x7c] sm:$0xf] %v2783
        %s2848 = sand.u32 %s140, 1
        %s2849 = scalar_lea.sflag [#allocation4], %s2848
        %s2850 = sand.u32 %s140, 1
        %s2851 = smul.addr %s2850, 128
        %s2852 = scalar_lea.vmem [#allocation8], %s2851
        %s2853 = sand.u32 %s168, 1
        %s2854 = scalar_lea.sflag [#allocation10], %s2853
        %s2855 = sand.u32 %s168, 1
        %s2856 = smul.addr %s2855, 128
        %s2857 = scalar_lea.vmem [#allocation9], %s2856
        // Predicated region
        $region49: #{tpu_custom_call.1} parent=35 // pred_check
          %p2858 = pneg %p150
        $region50: #{tpu_custom_call.1} parent=35 // pred_check_branch
          %2860 = sbr.rel (%p2858) target = $region52
        $region51: #{tpu_custom_call.1} parent=35 // pred_region
          %s2861 = smul.u32 32, %s32
          %s2863 = ssub.s32 2048, 2048
          %2864 = vsyncadd %s2849, %s2863
          %s2865 = smul.addr %s31, 32
          %s2866 = sadd.s32 %s2861, %s2865
          %s2867 = smul.addr %s2866, 64
          %s2868 = scalar_lea.hbm %s4, %s2867
          %s2869 = sshll.u32 %s2852, 4
          %s2870 = int_to_ptr.vmem [resolvable:$true] %s2869
          %2875 = dma.vmem_to_hbm [thread:$0]  %s2870, 2048, %s2868, %s2849, 64, 64, 4
        $region52: #{tpu_custom_call.1} parent=35 // pred_fallthru
          _
        // Predicated region
        $region53: #{tpu_custom_call.1} parent=35 // pred_check
          %p2876 = pneg %p178
        $region54: #{tpu_custom_call.1} parent=35 // pred_check_branch
          %2878 = sbr.rel (%p2876) target = $region56
        $region55: #{tpu_custom_call.1} parent=35 // pred_region
          %s2879 = smul.u32 32, %s32
          %s2881 = ssub.s32 2048, 2048
          %2882 = vsyncadd %s2854, %s2881
          %s2883 = smul.addr %s31, 32
          %s2884 = sadd.s32 %s2879, %s2883
          %s2885 = smul.addr %s2884, 64
          %s2886 = scalar_lea.hbm %s5, %s2885
          %s2887 = sshll.u32 %s2857, 4
          %s2888 = int_to_ptr.vmem [resolvable:$true] %s2887
          %2893 = dma.vmem_to_hbm [thread:$0]  %s2888, 2048, %s2886, %s2854, 64, 64, 4
        $region56: #{tpu_custom_call.1} parent=35 // pred_fallthru
          _
      $region36: #{tpu_custom_call.1} parent=5 // pred_fallthru
        _
      %p2894 = scmp.le.s32.totalorder 2, %s22
      // Predicated region
      $region57: #{tpu_custom_call.1} parent=5 // pred_check
        %p2895 = pneg %p2894
      $region58: #{tpu_custom_call.1} parent=5 // pred_check_branch
        %2897 = sbr.rel (%p2895) target = $region60
      $region59: #{tpu_custom_call.1} parent=5 // pred_region
        %s2898 = ssub.s32 %s22, 2
        // Predicated region
        $region61: #{tpu_custom_call.1} parent=59 // pred_check
          %p2899 = pneg %p156
        $region62: #{tpu_custom_call.1} parent=59 // pred_check_branch
          %2901 = sbr.rel (%p2899) target = $region64
        $region63: #{tpu_custom_call.1} parent=59 // pred_region
          %s2902 = sand.u32 %s141, 1
          %s2903 = scalar_lea.sflag [#allocation4], %s2902
          %s2904 = sand.u32 %s141, 1
          %s2905 = smul.addr %s2904, 128
          %s2906 = scalar_lea.vmem [#allocation8], %s2905
          %2907 = dma.done %s2903, 2048
        $region64: #{tpu_custom_call.1} parent=59 // pred_fallthru
          _
        // Predicated region
        $region65: #{tpu_custom_call.1} parent=59 // pred_check
          %p2908 = pneg %p184
        $region66: #{tpu_custom_call.1} parent=59 // pred_check_branch
          %2910 = sbr.rel (%p2908) target = $region68
        $region67: #{tpu_custom_call.1} parent=59 // pred_region
          %s2911 = sand.u32 %s169, 1
          %s2912 = scalar_lea.sflag [#allocation10], %s2911
          %s2913 = sand.u32 %s169, 1
          %s2914 = smul.addr %s2913, 128
          %s2915 = scalar_lea.vmem [#allocation9], %s2914
          %2916 = dma.done %s2912, 2048
        $region68: #{tpu_custom_call.1} parent=59 // pred_fallthru
          _
      $region60: #{tpu_custom_call.1} parent=5 // pred_fallthru
        _
    $region6: #{tpu_custom_call.1} parent=1 // loop_footer
      %s26 = sadd.s32 1, %s22
    $region7: #{tpu_custom_call.1} parent=1 // loop_footer_branch
      %21 = sbr.rel target = $region3
    $region8: #{tpu_custom_call.1} parent=1 // loop_exit
      _
    %2917 = vsyncpa [#allocation3], 1
    %s2918 = scalar_lea.sflag [#allocation3], 1
    %2919 = vsyncpa %s2918, 1
    %2920 = vsyncpa [#allocation6], 1
    %2921 = vsyncpa [#allocation4], 1
    %s2922 = scalar_lea.sflag [#allocation4], 1
    %2923 = vsyncpa %s2922, 1
    %2924 = vsyncpa [#allocation10], 1
    %s2925 = scalar_lea.sflag [#allocation10], 1
    %2926 = vsyncpa %s2925, 1

</llo_original>
